<compile_context>
chip_gen: v7x
topology: tpu7x:2x2x1
jax: 0.10.0
libtpu: 0.0.40
codegen_flags: <defaults>
</compile_context>

<pallas_src>
import jax
import jax.numpy as jnp
from jax import lax
from jax.experimental import pallas as pl
from jax.experimental.pallas import tpu as pltpu


def _two_layer_birnn_kernel(
    lengths_ref,              # [B, 1]    int32
    x2_ref,                   # [T*B, 2E] mxu dtype; row block t = [x[t] | x[T-1-t]]
    wi0_ref,                  # [2E, 2H]  blockdiag(W_ih_l0^T, W_ih_l0_rev^T)
    b0_ref,                   # [1, 2H]   f32 fused b_ih + b_hh (fwd | bwd)
    wh0_ref,                  # [2H, 2H]  blockdiag(W_hh_l0^T, W_hh_l0_rev^T)
    wi1f_ref, b1f_ref,        # [2H, H], [1, H]  layer-1 fwd input projection
    wi1b_ref, b1b_ref,        # [2H, H], [1, H]  layer-1 bwd input projection
    wh1f_ref,                 # [H, H]           layer-1 fwd hidden weight
    wfcf_ref, wfcb_ref,       # [H, O], [H, O]   fc weight split (fwd | bwd rows)
    bfc_ref,                  # [1, O]
    out_ref,                  # [B, O]    f32
    xp0_ref,                  # scratch [T*B, 2H] f32: hoisted layer-0 projections
    seq01_ref,                # scratch [T*B, 2H] f32: layer-0 outputs (time-aligned)
    xp1_ref,                  # scratch [T*B, H]  f32: hoisted layer-1 fwd projections
):
    TB, H2 = xp0_ref.shape
    H = H2 // 2
    B = lengths_ref.shape[0]
    T = TB // B
    mxu = x2_ref.dtype        # MXU operand dtype (f32 or bf16); accumulation f32

    def dot(a, b):
        return jnp.dot(a.astype(mxu), b.astype(mxu),
                       preferred_element_type=jnp.float32)

    # ---- masks: built once, pre-broadcast to full vector width (#5) ----
    lengths = lengths_ref[...]                                    # [B, 1] i32
    lane = lax.broadcasted_iota(jnp.int32, (B, H2), 1)            # [B, 2H] i32
    len2h = jnp.broadcast_to(lengths, (B, H2))                    # [B, 2H] i32
    lenh = jnp.broadcast_to(lengths, (B, H))                      # [B, H]  i32
    # layer-0 fused-carry mask: fwd lanes (<H) use time i, bwd lanes time T-1-i
    cmask0 = [len2h > jnp.where(lane < H, i, T - 1 - i) for i in range(T)]
    mask1 = [lenh > i for i in range(T)]                          # layer-1 fwd
    lastm = [len2h == (t + 1) for t in range(T)]                  # t == len-1

    # ---- hoisted layer-0 input projection (#3): one dot, all t, fwd+bwd ----
    xp0_ref[...] = dot(x2_ref[...], wi0_ref[...]) + b0_ref[...]

    # ---- layer 0: fused fwd+bwd recurrence (#2), fully unrolled ----
    wh0 = wh0_ref[...]
    h = None                                                      # [B, 2H]
    for i in range(T):
        tb = T - 1 - i
        pre = xp0_ref[pl.ds(i * B, B), :]                         # [B, 2H]
        if h is not None:                                         # step 0: h == 0
            pre = pre + dot(h, wh0)
        h_new = jnp.tanh(pre)
        # Time-aligned layer-0 outputs: fwd at time i, bwd at time tb.  Padded
        # rows are never consumed downstream (frozen carries + len-1 gather),
        # so the unmasked value is stored (saves 2 selects / step).
        seq01_ref[pl.ds(i * B, B), :H] = h_new[:, :H]
        seq01_ref[pl.ds(tb * B, B), H:] = h_new[:, H:]
        h = jnp.where(cmask0[i], h_new, h if h is not None else 0.0)

    # ---- layer 1 forward: hoisted projection + unrolled recurrence ----
    xp1_ref[...] = dot(seq01_ref[...], wi1f_ref[...]) + b1f_ref[...]
    wh1 = wh1f_ref[...]
    h_f = None                                                    # [B, H]
    for i in range(T):
        pre = xp1_ref[pl.ds(i * B, B), :]
        if h_f is not None:
            pre = pre + dot(h_f, wh1)
        h_new = jnp.tanh(pre)
        h_f = jnp.where(mask1[i], h_new, h_f if h_f is not None else 0.0)
    # h_f == layer-1 forward output at t = len-1 (masked updates freeze it).

    # ---- layer 1 backward output at t = len-1 (#1): dead recurrence removed.
    # At t = len-1 the backward hidden is still 0, so the value is exactly
    # tanh(x1[len-1] @ W_ih_b^T + b): gather x1[len-1], one dot, one tanh.
    s1_last = jnp.zeros((B, H2), jnp.float32)
    for t in range(T):
        s1_last = jnp.where(lastm[t], seq01_ref[pl.ds(t * B, B), :], s1_last)
    h_b_last = jnp.tanh(dot(s1_last, wi1b_ref[...]) + b1b_ref[...])

    # ---- final linear, split-weight form (#6): no lane concat on the tail ----
    out_ref[...] = (dot(h_f, wfcf_ref[...]) + dot(h_b_last, wfcb_ref[...])
                    + bfc_ref[...])


def two_layer_rnn_forward(params, x_tokens, lengths, *, mxu_dtype=jnp.float32):
    """Forward pass equivalent to TwoLayerRNN(x_tokens, lengths).

    Requires lengths >= 1 (same contract as torch pack_padded_sequence).
    `mxu_dtype=jnp.bfloat16` enables bf16 MXU operands (#4) — the real-size
    lever on all TPU generations — while elementwise math stays f32.
    """
    emb = params["embedding"][x_tokens].astype(jnp.float32)       # [B, T, E]
    B, T, E = emb.shape
    H = params["w_hh_l0"].shape[0]
    O = params["fc_w"].shape[0]

    tr = jnp.transpose
    cat = jnp.concatenate

    def blockdiag(a, b):
        m, n = a.shape
        p, q = b.shape
        return cat([cat([a, jnp.zeros((m, q), a.dtype)], axis=1),
                    cat([jnp.zeros((p, n), b.dtype), b], axis=1)], axis=0)

    # Time-major input; backward half time-reversed and fused along lanes so
    # the kernel's hoisted layer-0 projection and per-step slices are aligned.
    x_tbe = tr(emb, (1, 0, 2))                                    # [T, B, E]
    x2 = cat([x_tbe, x_tbe[::-1]], axis=-1).reshape(T * B, 2 * E)

    wi0 = blockdiag(tr(params["w_ih_l0"]), tr(params["w_ih_l0_reverse"]))   # [2E,2H]
    b0 = cat([params["b_ih_l0"] + params["b_hh_l0"],
              params["b_ih_l0_reverse"] + params["b_hh_l0_reverse"]]).reshape(1, 2 * H)
    wh0 = blockdiag(tr(params["w_hh_l0"]), tr(params["w_hh_l0_reverse"]))   # [2H,2H]

    wi1f = tr(params["w_ih_l1"])                                            # [2H,H]
    b1f = (params["b_ih_l1"] + params["b_hh_l1"]).reshape(1, H)
    wi1b = tr(params["w_ih_l1_reverse"])                                    # [2H,H]
    b1b = (params["b_ih_l1_reverse"] + params["b_hh_l1_reverse"]).reshape(1, H)
    wh1f = tr(params["w_hh_l1"])                                            # [H,H]

    wfc = tr(params["fc_w"])                                                # [2H,O]
    wfcf, wfcb = wfc[:H], wfc[H:]
    bfc = params["fc_b"].reshape(1, O)

    c = lambda w: w.astype(mxu_dtype)     # MXU operands only; biases stay f32
    args = [
        lengths.astype(jnp.int32).reshape(B, 1),
        c(x2),
        c(wi0), b0, c(wh0),
        c(wi1f), b1f, c(wi1b), b1b, c(wh1f),
        c(wfcf), c(wfcb), bfc,
    ]

    # Single grid-less invocation: everything fits VMEM comfortably at these
    # shapes.  At real sizes: on v7x add a batch grid with
    # dimension_semantics=("parallel",) and tile B via BlockSpec sized for the
    # 64 MiB VMEM; on v5e/v6e prefer one large B tile (128 MiB VMEM) instead.
    return pl.pallas_call(
        _two_layer_birnn_kernel,
        out_shape=jax.ShapeDtypeStruct((B, O), jnp.float32),
        in_specs=[pl.BlockSpec(memory_space=pltpu.MemorySpace.VMEM)] * len(args),
        out_specs=pl.BlockSpec(memory_space=pltpu.MemorySpace.VMEM),
        scratch_shapes=[
            pltpu.VMEM((T * B, 2 * H), jnp.float32),   # layer-0 input projections
            pltpu.VMEM((T * B, 2 * H), jnp.float32),   # layer-0 outputs
            pltpu.VMEM((T * B, H), jnp.float32),       # layer-1 fwd projections
        ],
    )(*args)


def init_params(key, vocab_size, E, H, O):
    ks = iter(jax.random.split(key, 20))

    def u(shape, scale):
        return jax.random.uniform(next(ks), shape, jnp.float32, -scale, scale)

    s = 1.0 / float(H) ** 0.5
    s2 = 1.0 / float(2 * H) ** 0.5
    p = {"embedding": jax.random.normal(next(ks), (vocab_size, E), jnp.float32)}
    # layer 0 (input E) and layer 1 (input 2H), forward + reverse, PyTorch shapes
    p["w_ih_l0"] = u((H, E), s);             p["w_hh_l0"] = u((H, H), s)
    p["b_ih_l0"] = u((H,), s);               p["b_hh_l0"] = u((H,), s)
    p["w_ih_l0_reverse"] = u((H, E), s);     p["w_hh_l0_reverse"] = u((H, H), s)
    p["b_ih_l0_reverse"] = u((H,), s);       p["b_hh_l0_reverse"] = u((H,), s)
    p["w_ih_l1"] = u((H, 2 * H), s);         p["w_hh_l1"] = u((H, H), s)
    p["b_ih_l1"] = u((H,), s);               p["b_hh_l1"] = u((H,), s)
    p["w_ih_l1_reverse"] = u((H, 2 * H), s); p["w_hh_l1_reverse"] = u((H, H), s)
    p["b_ih_l1_reverse"] = u((H,), s);       p["b_hh_l1_reverse"] = u((H,), s)
    p["fc_w"] = u((O, 2 * H), s2);           p["fc_b"] = u((O,), s2)
    return p


def reference_forward(params, x_tokens, lengths):
    # Pure-JAX, highest-precision reference with PyTorch packed-sequence
    # semantics (lengths >= 1).
    emb = params["embedding"][x_tokens].astype(jnp.float32)       # [B, T, E]
    B, T, _ = emb.shape
    H = params["w_hh_l0"].shape[0]
    lengths = lengths.astype(jnp.int32)

    def run_dir(x_seq, wi, wh, bi, bh, reverse):
        h = jnp.zeros((B, H), jnp.float32)
        outs = [None] * T
        ts = range(T - 1, -1, -1) if reverse else range(T)
        for t in ts:
            h_new = jnp.tanh(
                jnp.dot(x_seq[:, t], wi.T, precision="highest")
                + jnp.dot(h, wh.T, precision="highest") + bi + bh)
            valid = (lengths > t)[:, None]
            h = jnp.where(valid, h_new, h)
            outs[t] = jnp.where(valid, h_new, 0.0)
        return jnp.stack(outs, axis=1)

    f0 = run_dir(emb, params["w_ih_l0"], params["w_hh_l0"],
                 params["b_ih_l0"], params["b_hh_l0"], False)
    b0 = run_dir(emb, params["w_ih_l0_reverse"], params["w_hh_l0_reverse"],
                 params["b_ih_l0_reverse"], params["b_hh_l0_reverse"], True)
    x1 = jnp.concatenate([f0, b0], axis=-1)
    f1 = run_dir(x1, params["w_ih_l1"], params["w_hh_l1"],
                 params["b_ih_l1"], params["b_hh_l1"], False)
    b1 = run_dir(x1, params["w_ih_l1_reverse"], params["w_hh_l1_reverse"],
                 params["b_ih_l1_reverse"], params["b_hh_l1_reverse"], True)
    out_seq = jnp.concatenate([f1, b1], axis=-1)                  # [B, T, 2H]
    last = out_seq[jnp.arange(B), lengths - 1]                    # [B, 2H]
    return jnp.dot(last, params["fc_w"].T, precision="highest") + params["fc_b"]


if __name__ == "__main__":
    VOCAB, E, H, O = 50, 16, 32, 4
    B, T = 8, 8

    key = jax.random.PRNGKey(0)
    k_p, k_x = jax.random.split(key)
    params = init_params(k_p, VOCAB, E, H, O)
    x_tokens = jax.random.randint(k_x, (B, T), 0, VOCAB, dtype=jnp.int32)
    lengths = jnp.array([8, 5, 3, 8, 1, 6, 7, 2], dtype=jnp.int32)   # all >= 1

    ref = reference_forward(params, x_tokens, lengths)

    # f32 MXU-operand path.  Tolerance set deliberately (4x tighter than the
    # previous 2e-2): expected drift vs. the highest-precision reference is
    # ~1e-5 (accumulation order, MXU pass decomposition, EUP tanh); 5e-3 keeps
    # headroom while still catching masking/gather/layout bugs (>= 1e-1).
    out_f32 = jax.block_until_ready(two_layer_rnn_forward(params, x_tokens, lengths))
    assert out_f32.shape == (B, O)
    assert jnp.allclose(out_f32, ref, atol=5e-3, rtol=5e-3), (out_f32, ref)

    # bf16 MXU-operand path (#4).  Tolerance set deliberately for bf16 drift
    # over the two 8-step tanh recurrences (~1e-3..1e-2, bounded by tanh
    # contraction): 2e-2 gives margin without masking structural bugs.
    out_bf16 = jax.block_until_ready(
        two_layer_rnn_forward(params, x_tokens, lengths, mxu_dtype=jnp.bfloat16))
    assert jnp.allclose(out_bf16, ref, atol=2e-2, rtol=2e-2), (out_bf16, ref)

    print("KERNEL_OK")
</pallas_src>

<mosaic_0001>
module attributes {stable_mosaic.version = 11 : i64} {
  func.func @_two_layer_birnn_kernel(%arg0: memref<8x1xi32, #tpu.memory_space<vmem>>, %arg1: memref<64x32xf32, #tpu.memory_space<vmem>>, %arg2: memref<32x64xf32, #tpu.memory_space<vmem>>, %arg3: memref<1x64xf32, #tpu.memory_space<vmem>>, %arg4: memref<64x64xf32, #tpu.memory_space<vmem>>, %arg5: memref<64x32xf32, #tpu.memory_space<vmem>>, %arg6: memref<1x32xf32, #tpu.memory_space<vmem>>, %arg7: memref<64x32xf32, #tpu.memory_space<vmem>>, %arg8: memref<1x32xf32, #tpu.memory_space<vmem>>, %arg9: memref<32x32xf32, #tpu.memory_space<vmem>>, %arg10: memref<32x4xf32, #tpu.memory_space<vmem>>, %arg11: memref<32x4xf32, #tpu.memory_space<vmem>>, %arg12: memref<1x4xf32, #tpu.memory_space<vmem>>, %arg13: memref<8x4xf32, #tpu.memory_space<vmem>>, %arg14: memref<64x64xf32, #tpu.memory_space<vmem>>, %arg15: memref<64x64xf32, #tpu.memory_space<vmem>>, %arg16: memref<64x32xf32, #tpu.memory_space<vmem>>) attributes {dimension_semantics = [], scalar_prefetch = 0 : i64, scratch_operands = 3 : i64, tpu.core_type = #tpu.core_type<tc>} {
    %c0 = arith.constant 0 : index
    %c0_0 = arith.constant 0 : index
    %0 = vector.load %arg0[%c0, %c0_0] : memref<8x1xi32, #tpu.memory_space<vmem>>, vector<8x1xi32>
    %1 = tpu.iota {dimensions = array<i32: 1>} : vector<8x64xi32>
    %2 = vector.shape_cast %0 : vector<8x1xi32> to vector<8x1xi32>
    %3 = vector.broadcast %2 : vector<8x1xi32> to vector<8x64xi32>
    %4 = vector.shape_cast %0 : vector<8x1xi32> to vector<8x1xi32>
    %5 = vector.broadcast %4 : vector<8x1xi32> to vector<8x32xi32>
    %c32_i32 = arith.constant 32 : i32
    %6 = vector.broadcast %c32_i32 : i32 to vector<8x64xi32>
    %7 = arith.cmpi slt, %1, %6 : vector<8x64xi32>
    %c0_i32 = arith.constant 0 : i32
    %c7_i32 = arith.constant 7 : i32
    %8 = vector.broadcast %c0_i32 : i32 to vector<8x64xi32>
    %9 = vector.broadcast %c7_i32 : i32 to vector<8x64xi32>
    %10 = arith.select %7, %8, %9 : vector<8x64xi1>, vector<8x64xi32>
    %11 = arith.cmpi sgt, %3, %10 : vector<8x64xi32>
    %c32_i32_1 = arith.constant 32 : i32
    %12 = vector.broadcast %c32_i32_1 : i32 to vector<8x64xi32>
    %13 = arith.cmpi slt, %1, %12 : vector<8x64xi32>
    %c1_i32 = arith.constant 1 : i32
    %c6_i32 = arith.constant 6 : i32
    %14 = vector.broadcast %c1_i32 : i32 to vector<8x64xi32>
    %15 = vector.broadcast %c6_i32 : i32 to vector<8x64xi32>
    %16 = arith.select %13, %14, %15 : vector<8x64xi1>, vector<8x64xi32>
    %17 = arith.cmpi sgt, %3, %16 : vector<8x64xi32>
    %c32_i32_2 = arith.constant 32 : i32
    %18 = vector.broadcast %c32_i32_2 : i32 to vector<8x64xi32>
    %19 = arith.cmpi slt, %1, %18 : vector<8x64xi32>
    %c2_i32 = arith.constant 2 : i32
    %c5_i32 = arith.constant 5 : i32
    %20 = vector.broadcast %c2_i32 : i32 to vector<8x64xi32>
    %21 = vector.broadcast %c5_i32 : i32 to vector<8x64xi32>
    %22 = arith.select %19, %20, %21 : vector<8x64xi1>, vector<8x64xi32>
    %23 = arith.cmpi sgt, %3, %22 : vector<8x64xi32>
    %c32_i32_3 = arith.constant 32 : i32
    %24 = vector.broadcast %c32_i32_3 : i32 to vector<8x64xi32>
    %25 = arith.cmpi slt, %1, %24 : vector<8x64xi32>
    %c3_i32 = arith.constant 3 : i32
    %c4_i32 = arith.constant 4 : i32
    %26 = vector.broadcast %c3_i32 : i32 to vector<8x64xi32>
    %27 = vector.broadcast %c4_i32 : i32 to vector<8x64xi32>
    %28 = arith.select %25, %26, %27 : vector<8x64xi1>, vector<8x64xi32>
    %29 = arith.cmpi sgt, %3, %28 : vector<8x64xi32>
    %c32_i32_4 = arith.constant 32 : i32
    %30 = vector.broadcast %c32_i32_4 : i32 to vector<8x64xi32>
    %31 = arith.cmpi slt, %1, %30 : vector<8x64xi32>
    %c4_i32_5 = arith.constant 4 : i32
    %c3_i32_6 = arith.constant 3 : i32
    %32 = vector.broadcast %c4_i32_5 : i32 to vector<8x64xi32>
    %33 = vector.broadcast %c3_i32_6 : i32 to vector<8x64xi32>
    %34 = arith.select %31, %32, %33 : vector<8x64xi1>, vector<8x64xi32>
    %35 = arith.cmpi sgt, %3, %34 : vector<8x64xi32>
    %c32_i32_7 = arith.constant 32 : i32
    %36 = vector.broadcast %c32_i32_7 : i32 to vector<8x64xi32>
    %37 = arith.cmpi slt, %1, %36 : vector<8x64xi32>
    %c5_i32_8 = arith.constant 5 : i32
    %c2_i32_9 = arith.constant 2 : i32
    %38 = vector.broadcast %c5_i32_8 : i32 to vector<8x64xi32>
    %39 = vector.broadcast %c2_i32_9 : i32 to vector<8x64xi32>
    %40 = arith.select %37, %38, %39 : vector<8x64xi1>, vector<8x64xi32>
    %41 = arith.cmpi sgt, %3, %40 : vector<8x64xi32>
    %c32_i32_10 = arith.constant 32 : i32
    %42 = vector.broadcast %c32_i32_10 : i32 to vector<8x64xi32>
    %43 = arith.cmpi slt, %1, %42 : vector<8x64xi32>
    %c6_i32_11 = arith.constant 6 : i32
    %c1_i32_12 = arith.constant 1 : i32
    %44 = vector.broadcast %c6_i32_11 : i32 to vector<8x64xi32>
    %45 = vector.broadcast %c1_i32_12 : i32 to vector<8x64xi32>
    %46 = arith.select %43, %44, %45 : vector<8x64xi1>, vector<8x64xi32>
    %47 = arith.cmpi sgt, %3, %46 : vector<8x64xi32>
    %c0_i32_13 = arith.constant 0 : i32
    %48 = vector.broadcast %c0_i32_13 : i32 to vector<8x32xi32>
    %49 = arith.cmpi sgt, %5, %48 : vector<8x32xi32>
    %c1_i32_14 = arith.constant 1 : i32
    %50 = vector.broadcast %c1_i32_14 : i32 to vector<8x32xi32>
    %51 = arith.cmpi sgt, %5, %50 : vector<8x32xi32>
    %c2_i32_15 = arith.constant 2 : i32
    %52 = vector.broadcast %c2_i32_15 : i32 to vector<8x32xi32>
    %53 = arith.cmpi sgt, %5, %52 : vector<8x32xi32>
    %c3_i32_16 = arith.constant 3 : i32
    %54 = vector.broadcast %c3_i32_16 : i32 to vector<8x32xi32>
    %55 = arith.cmpi sgt, %5, %54 : vector<8x32xi32>
    %c4_i32_17 = arith.constant 4 : i32
    %56 = vector.broadcast %c4_i32_17 : i32 to vector<8x32xi32>
    %57 = arith.cmpi sgt, %5, %56 : vector<8x32xi32>
    %c5_i32_18 = arith.constant 5 : i32
    %58 = vector.broadcast %c5_i32_18 : i32 to vector<8x32xi32>
    %59 = arith.cmpi sgt, %5, %58 : vector<8x32xi32>
    %c6_i32_19 = arith.constant 6 : i32
    %60 = vector.broadcast %c6_i32_19 : i32 to vector<8x32xi32>
    %61 = arith.cmpi sgt, %5, %60 : vector<8x32xi32>
    %c7_i32_20 = arith.constant 7 : i32
    %62 = vector.broadcast %c7_i32_20 : i32 to vector<8x32xi32>
    %63 = arith.cmpi sgt, %5, %62 : vector<8x32xi32>
    %c1_i32_21 = arith.constant 1 : i32
    %64 = vector.broadcast %c1_i32_21 : i32 to vector<8x64xi32>
    %65 = arith.cmpi eq, %3, %64 : vector<8x64xi32>
    %c2_i32_22 = arith.constant 2 : i32
    %66 = vector.broadcast %c2_i32_22 : i32 to vector<8x64xi32>
    %67 = arith.cmpi eq, %3, %66 : vector<8x64xi32>
    %c3_i32_23 = arith.constant 3 : i32
    %68 = vector.broadcast %c3_i32_23 : i32 to vector<8x64xi32>
    %69 = arith.cmpi eq, %3, %68 : vector<8x64xi32>
    %c4_i32_24 = arith.constant 4 : i32
    %70 = vector.broadcast %c4_i32_24 : i32 to vector<8x64xi32>
    %71 = arith.cmpi eq, %3, %70 : vector<8x64xi32>
    %c5_i32_25 = arith.constant 5 : i32
    %72 = vector.broadcast %c5_i32_25 : i32 to vector<8x64xi32>
    %73 = arith.cmpi eq, %3, %72 : vector<8x64xi32>
    %c6_i32_26 = arith.constant 6 : i32
    %74 = vector.broadcast %c6_i32_26 : i32 to vector<8x64xi32>
    %75 = arith.cmpi eq, %3, %74 : vector<8x64xi32>
    %c7_i32_27 = arith.constant 7 : i32
    %76 = vector.broadcast %c7_i32_27 : i32 to vector<8x64xi32>
    %77 = arith.cmpi eq, %3, %76 : vector<8x64xi32>
    %c8_i32 = arith.constant 8 : i32
    %78 = vector.broadcast %c8_i32 : i32 to vector<8x64xi32>
    %79 = arith.cmpi eq, %3, %78 : vector<8x64xi32>
    %c0_28 = arith.constant 0 : index
    %c0_29 = arith.constant 0 : index
    %80 = vector.load %arg1[%c0_28, %c0_29] : memref<64x32xf32, #tpu.memory_space<vmem>>, vector<64x32xf32>
    %c0_30 = arith.constant 0 : index
    %c0_31 = arith.constant 0 : index
    %81 = vector.load %arg2[%c0_30, %c0_31] : memref<32x64xf32, #tpu.memory_space<vmem>>, vector<32x64xf32>
    %cst = arith.constant dense<0.000000e+00> : vector<64x64xf32>
    %82 = tpu.matmul %80, %81, %cst {dimension_numbers = #tpu.dot_dimension_numbers<[1], [0], [0], [1], [0, 0, 1, 1], [], []>} : vector<64x32xf32>, vector<32x64xf32>, vector<64x64xf32> -> vector<64x64xf32>
    %c0_32 = arith.constant 0 : index
    %c0_33 = arith.constant 0 : index
    %83 = vector.load %arg3[%c0_32, %c0_33] : memref<1x64xf32, #tpu.memory_space<vmem>>, vector<1x64xf32>
    %84 = vector.broadcast %83 : vector<1x64xf32> to vector<64x64xf32>
    %85 = arith.addf %82, %84 : vector<64x64xf32>
    %c0_34 = arith.constant 0 : index
    %c0_35 = arith.constant 0 : index
    %86 = vector.load %arg14[%c0_34, %c0_35] : memref<64x64xf32, #tpu.memory_space<vmem>>, vector<64x64xf32>
    tpu.vector_store %arg14[%c0_34, %c0_35], %85 {strides = array<i32>} : memref<64x64xf32, #tpu.memory_space<vmem>>, vector<64x64xf32>,
    %c0_36 = arith.constant 0 : index
    %c0_37 = arith.constant 0 : index
    %87 = vector.load %arg4[%c0_36, %c0_37] : memref<64x64xf32, #tpu.memory_space<vmem>>, vector<64x64xf32>
    %c0_38 = arith.constant 0 : index
    %c0_39 = arith.constant 0 : index
    %88 = vector.load %arg14[%c0_38, %c0_39] : memref<64x64xf32, #tpu.memory_space<vmem>>, vector<8x64xf32>
    %89 = math.tanh %88 : vector<8x64xf32>
    %90 = vector.extract_strided_slice %89 {offsets = [0, 0], sizes = [8, 32], strides = [1, 1]} : vector<8x64xf32> to vector<8x32xf32>
    %c0_40 = arith.constant 0 : index
    %c0_41 = arith.constant 0 : index
    %91 = vector.load %arg15[%c0_40, %c0_41] : memref<64x64xf32, #tpu.memory_space<vmem>>, vector<8x32xf32>
    tpu.vector_store %arg15[%c0_40, %c0_41], %90 {strides = array<i32>} : memref<64x64xf32, #tpu.memory_space<vmem>>, vector<8x32xf32>,
    %92 = vector.extract_strided_slice %89 {offsets = [0, 32], sizes = [8, 32], strides = [1, 1]} : vector<8x64xf32> to vector<8x32xf32>
    %c56 = arith.constant 56 : index
    %c32 = arith.constant 32 : index
    %93 = vector.load %arg15[%c56, %c32] : memref<64x64xf32, #tpu.memory_space<vmem>>, vector<8x32xf32>
    tpu.vector_store %arg15[%c56, %c32], %92 {strides = array<i32>} : memref<64x64xf32, #tpu.memory_space<vmem>>, vector<8x32xf32>,
    %cst_42 = arith.constant 0.000000e+00 : f32
    %94 = vector.broadcast %cst_42 : f32 to vector<8x64xf32>
    %95 = arith.select %11, %89, %94 : vector<8x64xi1>, vector<8x64xf32>
    %c8 = arith.constant 8 : index
    %c0_43 = arith.constant 0 : index
    %96 = vector.load %arg14[%c8, %c0_43] : memref<64x64xf32, #tpu.memory_space<vmem>>, vector<8x64xf32>
    %cst_44 = arith.constant dense<0.000000e+00> : vector<8x64xf32>
    %97 = tpu.matmul %95, %87, %cst_44 {dimension_numbers = #tpu.dot_dimension_numbers<[1], [0], [0], [1], [0, 0, 1, 1], [], []>} : vector<8x64xf32>, vector<64x64xf32>, vector<8x64xf32> -> vector<8x64xf32>
    %98 = arith.addf %96, %97 : vector<8x64xf32>
    %99 = math.tanh %98 : vector<8x64xf32>
    %100 = vector.extract_strided_slice %99 {offsets = [0, 0], sizes = [8, 32], strides = [1, 1]} : vector<8x64xf32> to vector<8x32xf32>
    %c8_45 = arith.constant 8 : index
    %c0_46 = arith.constant 0 : index
    %101 = vector.load %arg15[%c8_45, %c0_46] : memref<64x64xf32, #tpu.memory_space<vmem>>, vector<8x32xf32>
    tpu.vector_store %arg15[%c8_45, %c0_46], %100 {strides = array<i32>} : memref<64x64xf32, #tpu.memory_space<vmem>>, vector<8x32xf32>,
    %102 = vector.extract_strided_slice %99 {offsets = [0, 32], sizes = [8, 32], strides = [1, 1]} : vector<8x64xf32> to vector<8x32xf32>
    %c48 = arith.constant 48 : index
    %c32_47 = arith.constant 32 : index
    %103 = vector.load %arg15[%c48, %c32_47] : memref<64x64xf32, #tpu.memory_space<vmem>>, vector<8x32xf32>
    tpu.vector_store %arg15[%c48, %c32_47], %102 {strides = array<i32>} : memref<64x64xf32, #tpu.memory_space<vmem>>, vector<8x32xf32>,
    %104 = arith.select %17, %99, %95 : vector<8x64xi1>, vector<8x64xf32>
    %c16 = arith.constant 16 : index
    %c0_48 = arith.constant 0 : index
    %105 = vector.load %arg14[%c16, %c0_48] : memref<64x64xf32, #tpu.memory_space<vmem>>, vector<8x64xf32>
    %cst_49 = arith.constant dense<0.000000e+00> : vector<8x64xf32>
    %106 = tpu.matmul %104, %87, %cst_49 {dimension_numbers = #tpu.dot_dimension_numbers<[1], [0], [0], [1], [0, 0, 1, 1], [], []>} : vector<8x64xf32>, vector<64x64xf32>, vector<8x64xf32> -> vector<8x64xf32>
    %107 = arith.addf %105, %106 : vector<8x64xf32>
    %108 = math.tanh %107 : vector<8x64xf32>
    %109 = vector.extract_strided_slice %108 {offsets = [0, 0], sizes = [8, 32], strides = [1, 1]} : vector<8x64xf32> to vector<8x32xf32>
    %c16_50 = arith.constant 16 : index
    %c0_51 = arith.constant 0 : index
    %110 = vector.load %arg15[%c16_50, %c0_51] : memref<64x64xf32, #tpu.memory_space<vmem>>, vector<8x32xf32>
    tpu.vector_store %arg15[%c16_50, %c0_51], %109 {strides = array<i32>} : memref<64x64xf32, #tpu.memory_space<vmem>>, vector<8x32xf32>,
    %111 = vector.extract_strided_slice %108 {offsets = [0, 32], sizes = [8, 32], strides = [1, 1]} : vector<8x64xf32> to vector<8x32xf32>
    %c40 = arith.constant 40 : index
    %c32_52 = arith.constant 32 : index
    %112 = vector.load %arg15[%c40, %c32_52] : memref<64x64xf32, #tpu.memory_space<vmem>>, vector<8x32xf32>
    tpu.vector_store %arg15[%c40, %c32_52], %111 {strides = array<i32>} : memref<64x64xf32, #tpu.memory_space<vmem>>, vector<8x32xf32>,
    %113 = arith.select %23, %108, %104 : vector<8x64xi1>, vector<8x64xf32>
    %c24 = arith.constant 24 : index
    %c0_53 = arith.constant 0 : index
    %114 = vector.load %arg14[%c24, %c0_53] : memref<64x64xf32, #tpu.memory_space<vmem>>, vector<8x64xf32>
    %cst_54 = arith.constant dense<0.000000e+00> : vector<8x64xf32>
    %115 = tpu.matmul %113, %87, %cst_54 {dimension_numbers = #tpu.dot_dimension_numbers<[1], [0], [0], [1], [0, 0, 1, 1], [], []>} : vector<8x64xf32>, vector<64x64xf32>, vector<8x64xf32> -> vector<8x64xf32>
    %116 = arith.addf %114, %115 : vector<8x64xf32>
    %117 = math.tanh %116 : vector<8x64xf32>
    %118 = vector.extract_strided_slice %117 {offsets = [0, 0], sizes = [8, 32], strides = [1, 1]} : vector<8x64xf32> to vector<8x32xf32>
    %c24_55 = arith.constant 24 : index
    %c0_56 = arith.constant 0 : index
    %119 = vector.load %arg15[%c24_55, %c0_56] : memref<64x64xf32, #tpu.memory_space<vmem>>, vector<8x32xf32>
    tpu.vector_store %arg15[%c24_55, %c0_56], %118 {strides = array<i32>} : memref<64x64xf32, #tpu.memory_space<vmem>>, vector<8x32xf32>,
    %120 = vector.extract_strided_slice %117 {offsets = [0, 32], sizes = [8, 32], strides = [1, 1]} : vector<8x64xf32> to vector<8x32xf32>
    %c32_57 = arith.constant 32 : index
    %c32_58 = arith.constant 32 : index
    %121 = vector.load %arg15[%c32_57, %c32_58] : memref<64x64xf32, #tpu.memory_space<vmem>>, vector<8x32xf32>
    tpu.vector_store %arg15[%c32_57, %c32_58], %120 {strides = array<i32>} : memref<64x64xf32, #tpu.memory_space<vmem>>, vector<8x32xf32>,
    %122 = arith.select %29, %117, %113 : vector<8x64xi1>, vector<8x64xf32>
    %c32_59 = arith.constant 32 : index
    %c0_60 = arith.constant 0 : index
    %123 = vector.load %arg14[%c32_59, %c0_60] : memref<64x64xf32, #tpu.memory_space<vmem>>, vector<8x64xf32>
    %cst_61 = arith.constant dense<0.000000e+00> : vector<8x64xf32>
    %124 = tpu.matmul %122, %87, %cst_61 {dimension_numbers = #tpu.dot_dimension_numbers<[1], [0], [0], [1], [0, 0, 1, 1], [], []>} : vector<8x64xf32>, vector<64x64xf32>, vector<8x64xf32> -> vector<8x64xf32>
    %125 = arith.addf %123, %124 : vector<8x64xf32>
    %126 = math.tanh %125 : vector<8x64xf32>
    %127 = vector.extract_strided_slice %126 {offsets = [0, 0], sizes = [8, 32], strides = [1, 1]} : vector<8x64xf32> to vector<8x32xf32>
    %c32_62 = arith.constant 32 : index
    %c0_63 = arith.constant 0 : index
    %128 = vector.load %arg15[%c32_62, %c0_63] : memref<64x64xf32, #tpu.memory_space<vmem>>, vector<8x32xf32>
    tpu.vector_store %arg15[%c32_62, %c0_63], %127 {strides = array<i32>} : memref<64x64xf32, #tpu.memory_space<vmem>>, vector<8x32xf32>,
    %129 = vector.extract_strided_slice %126 {offsets = [0, 32], sizes = [8, 32], strides = [1, 1]} : vector<8x64xf32> to vector<8x32xf32>
    %c24_64 = arith.constant 24 : index
    %c32_65 = arith.constant 32 : index
    %130 = vector.load %arg15[%c24_64, %c32_65] : memref<64x64xf32, #tpu.memory_space<vmem>>, vector<8x32xf32>
    tpu.vector_store %arg15[%c24_64, %c32_65], %129 {strides = array<i32>} : memref<64x64xf32, #tpu.memory_space<vmem>>, vector<8x32xf32>,
    %131 = arith.select %35, %126, %122 : vector<8x64xi1>, vector<8x64xf32>
    %c40_66 = arith.constant 40 : index
    %c0_67 = arith.constant 0 : index
    %132 = vector.load %arg14[%c40_66, %c0_67] : memref<64x64xf32, #tpu.memory_space<vmem>>, vector<8x64xf32>
    %cst_68 = arith.constant dense<0.000000e+00> : vector<8x64xf32>
    %133 = tpu.matmul %131, %87, %cst_68 {dimension_numbers = #tpu.dot_dimension_numbers<[1], [0], [0], [1], [0, 0, 1, 1], [], []>} : vector<8x64xf32>, vector<64x64xf32>, vector<8x64xf32> -> vector<8x64xf32>
    %134 = arith.addf %132, %133 : vector<8x64xf32>
    %135 = math.tanh %134 : vector<8x64xf32>
    %136 = vector.extract_strided_slice %135 {offsets = [0, 0], sizes = [8, 32], strides = [1, 1]} : vector<8x64xf32> to vector<8x32xf32>
    %c40_69 = arith.constant 40 : index
    %c0_70 = arith.constant 0 : index
    %137 = vector.load %arg15[%c40_69, %c0_70] : memref<64x64xf32, #tpu.memory_space<vmem>>, vector<8x32xf32>
    tpu.vector_store %arg15[%c40_69, %c0_70], %136 {strides = array<i32>} : memref<64x64xf32, #tpu.memory_space<vmem>>, vector<8x32xf32>,
    %138 = vector.extract_strided_slice %135 {offsets = [0, 32], sizes = [8, 32], strides = [1, 1]} : vector<8x64xf32> to vector<8x32xf32>
    %c16_71 = arith.constant 16 : index
    %c32_72 = arith.constant 32 : index
    %139 = vector.load %arg15[%c16_71, %c32_72] : memref<64x64xf32, #tpu.memory_space<vmem>>, vector<8x32xf32>
    tpu.vector_store %arg15[%c16_71, %c32_72], %138 {strides = array<i32>} : memref<64x64xf32, #tpu.memory_space<vmem>>, vector<8x32xf32>,
    %140 = arith.select %41, %135, %131 : vector<8x64xi1>, vector<8x64xf32>
    %c48_73 = arith.constant 48 : index
    %c0_74 = arith.constant 0 : index
    %141 = vector.load %arg14[%c48_73, %c0_74] : memref<64x64xf32, #tpu.memory_space<vmem>>, vector<8x64xf32>
    %cst_75 = arith.constant dense<0.000000e+00> : vector<8x64xf32>
    %142 = tpu.matmul %140, %87, %cst_75 {dimension_numbers = #tpu.dot_dimension_numbers<[1], [0], [0], [1], [0, 0, 1, 1], [], []>} : vector<8x64xf32>, vector<64x64xf32>, vector<8x64xf32> -> vector<8x64xf32>
    %143 = arith.addf %141, %142 : vector<8x64xf32>
    %144 = math.tanh %143 : vector<8x64xf32>
    %145 = vector.extract_strided_slice %144 {offsets = [0, 0], sizes = [8, 32], strides = [1, 1]} : vector<8x64xf32> to vector<8x32xf32>
    %c48_76 = arith.constant 48 : index
    %c0_77 = arith.constant 0 : index
    %146 = vector.load %arg15[%c48_76, %c0_77] : memref<64x64xf32, #tpu.memory_space<vmem>>, vector<8x32xf32>
    tpu.vector_store %arg15[%c48_76, %c0_77], %145 {strides = array<i32>} : memref<64x64xf32, #tpu.memory_space<vmem>>, vector<8x32xf32>,
    %147 = vector.extract_strided_slice %144 {offsets = [0, 32], sizes = [8, 32], strides = [1, 1]} : vector<8x64xf32> to vector<8x32xf32>
    %c8_78 = arith.constant 8 : index
    %c32_79 = arith.constant 32 : index
    %148 = vector.load %arg15[%c8_78, %c32_79] : memref<64x64xf32, #tpu.memory_space<vmem>>, vector<8x32xf32>
    tpu.vector_store %arg15[%c8_78, %c32_79], %147 {strides = array<i32>} : memref<64x64xf32, #tpu.memory_space<vmem>>, vector<8x32xf32>,
    %149 = arith.select %47, %144, %140 : vector<8x64xi1>, vector<8x64xf32>
    %c56_80 = arith.constant 56 : index
    %c0_81 = arith.constant 0 : index
    %150 = vector.load %arg14[%c56_80, %c0_81] : memref<64x64xf32, #tpu.memory_space<vmem>>, vector<8x64xf32>
    %cst_82 = arith.constant dense<0.000000e+00> : vector<8x64xf32>
    %151 = tpu.matmul %149, %87, %cst_82 {dimension_numbers = #tpu.dot_dimension_numbers<[1], [0], [0], [1], [0, 0, 1, 1], [], []>} : vector<8x64xf32>, vector<64x64xf32>, vector<8x64xf32> -> vector<8x64xf32>
    %152 = arith.addf %150, %151 : vector<8x64xf32>
    %153 = math.tanh %152 : vector<8x64xf32>
    %154 = vector.extract_strided_slice %153 {offsets = [0, 0], sizes = [8, 32], strides = [1, 1]} : vector<8x64xf32> to vector<8x32xf32>
    %c56_83 = arith.constant 56 : index
    %c0_84 = arith.constant 0 : index
    %155 = vector.load %arg15[%c56_83, %c0_84] : memref<64x64xf32, #tpu.memory_space<vmem>>, vector<8x32xf32>
    tpu.vector_store %arg15[%c56_83, %c0_84], %154 {strides = array<i32>} : memref<64x64xf32, #tpu.memory_space<vmem>>, vector<8x32xf32>,
    %156 = vector.extract_strided_slice %153 {offsets = [0, 32], sizes = [8, 32], strides = [1, 1]} : vector<8x64xf32> to vector<8x32xf32>
    %c0_85 = arith.constant 0 : index
    %c32_86 = arith.constant 32 : index
    %157 = vector.load %arg15[%c0_85, %c32_86] : memref<64x64xf32, #tpu.memory_space<vmem>>, vector<8x32xf32>
    tpu.vector_store %arg15[%c0_85, %c32_86], %156 {strides = array<i32>} : memref<64x64xf32, #tpu.memory_space<vmem>>, vector<8x32xf32>,
    %c0_87 = arith.constant 0 : index
    %c0_88 = arith.constant 0 : index
    %158 = vector.load %arg15[%c0_87, %c0_88] : memref<64x64xf32, #tpu.memory_space<vmem>>, vector<64x64xf32>
    %c0_89 = arith.constant 0 : index
    %c0_90 = arith.constant 0 : index
    %159 = vector.load %arg5[%c0_89, %c0_90] : memref<64x32xf32, #tpu.memory_space<vmem>>, vector<64x32xf32>
    %cst_91 = arith.constant dense<0.000000e+00> : vector<64x32xf32>
    %160 = tpu.matmul %158, %159, %cst_91 {dimension_numbers = #tpu.dot_dimension_numbers<[1], [0], [0], [1], [0, 0, 1, 1], [], []>} : vector<64x64xf32>, vector<64x32xf32>, vector<64x32xf32> -> vector<64x32xf32>
    %c0_92 = arith.constant 0 : index
    %c0_93 = arith.constant 0 : index
    %161 = vector.load %arg6[%c0_92, %c0_93] : memref<1x32xf32, #tpu.memory_space<vmem>>, vector<1x32xf32>
    %162 = vector.broadcast %161 : vector<1x32xf32> to vector<64x32xf32>
    %163 = arith.addf %160, %162 : vector<64x32xf32>
    %c0_94 = arith.constant 0 : index
    %c0_95 = arith.constant 0 : index
    %164 = vector.load %arg16[%c0_94, %c0_95] : memref<64x32xf32, #tpu.memory_space<vmem>>, vector<64x32xf32>
    tpu.vector_store %arg16[%c0_94, %c0_95], %163 {strides = array<i32>} : memref<64x32xf32, #tpu.memory_space<vmem>>, vector<64x32xf32>,
    %c0_96 = arith.constant 0 : index
    %c0_97 = arith.constant 0 : index
    %165 = vector.load %arg9[%c0_96, %c0_97] : memref<32x32xf32, #tpu.memory_space<vmem>>, vector<32x32xf32>
    %c0_98 = arith.constant 0 : index
    %c0_99 = arith.constant 0 : index
    %166 = vector.load %arg16[%c0_98, %c0_99] : memref<64x32xf32, #tpu.memory_space<vmem>>, vector<8x32xf32>
    %167 = math.tanh %166 : vector<8x32xf32>
    %cst_100 = arith.constant 0.000000e+00 : f32
    %168 = vector.broadcast %cst_100 : f32 to vector<8x32xf32>
    %169 = arith.select %49, %167, %168 : vector<8x32xi1>, vector<8x32xf32>
    %c8_101 = arith.constant 8 : index
    %c0_102 = arith.constant 0 : index
    %170 = vector.load %arg16[%c8_101, %c0_102] : memref<64x32xf32, #tpu.memory_space<vmem>>, vector<8x32xf32>
    %cst_103 = arith.constant dense<0.000000e+00> : vector<8x32xf32>
    %171 = tpu.matmul %169, %165, %cst_103 {dimension_numbers = #tpu.dot_dimension_numbers<[1], [0], [0], [1], [0, 0, 1, 1], [], []>} : vector<8x32xf32>, vector<32x32xf32>, vector<8x32xf32> -> vector<8x32xf32>
    %172 = arith.addf %170, %171 : vector<8x32xf32>
    %173 = math.tanh %172 : vector<8x32xf32>
    %174 = arith.select %51, %173, %169 : vector<8x32xi1>, vector<8x32xf32>
    %c16_104 = arith.constant 16 : index
    %c0_105 = arith.constant 0 : index
    %175 = vector.load %arg16[%c16_104, %c0_105] : memref<64x32xf32, #tpu.memory_space<vmem>>, vector<8x32xf32>
    %cst_106 = arith.constant dense<0.000000e+00> : vector<8x32xf32>
    %176 = tpu.matmul %174, %165, %cst_106 {dimension_numbers = #tpu.dot_dimension_numbers<[1], [0], [0], [1], [0, 0, 1, 1], [], []>} : vector<8x32xf32>, vector<32x32xf32>, vector<8x32xf32> -> vector<8x32xf32>
    %177 = arith.addf %175, %176 : vector<8x32xf32>
    %178 = math.tanh %177 : vector<8x32xf32>
    %179 = arith.select %53, %178, %174 : vector<8x32xi1>, vector<8x32xf32>
    %c24_107 = arith.constant 24 : index
    %c0_108 = arith.constant 0 : index
    %180 = vector.load %arg16[%c24_107, %c0_108] : memref<64x32xf32, #tpu.memory_space<vmem>>, vector<8x32xf32>
    %cst_109 = arith.constant dense<0.000000e+00> : vector<8x32xf32>
    %181 = tpu.matmul %179, %165, %cst_109 {dimension_numbers = #tpu.dot_dimension_numbers<[1], [0], [0], [1], [0, 0, 1, 1], [], []>} : vector<8x32xf32>, vector<32x32xf32>, vector<8x32xf32> -> vector<8x32xf32>
    %182 = arith.addf %180, %181 : vector<8x32xf32>
    %183 = math.tanh %182 : vector<8x32xf32>
    %184 = arith.select %55, %183, %179 : vector<8x32xi1>, vector<8x32xf32>
    %c32_110 = arith.constant 32 : index
    %c0_111 = arith.constant 0 : index
    %185 = vector.load %arg16[%c32_110, %c0_111] : memref<64x32xf32, #tpu.memory_space<vmem>>, vector<8x32xf32>
    %cst_112 = arith.constant dense<0.000000e+00> : vector<8x32xf32>
    %186 = tpu.matmul %184, %165, %cst_112 {dimension_numbers = #tpu.dot_dimension_numbers<[1], [0], [0], [1], [0, 0, 1, 1], [], []>} : vector<8x32xf32>, vector<32x32xf32>, vector<8x32xf32> -> vector<8x32xf32>
    %187 = arith.addf %185, %186 : vector<8x32xf32>
    %188 = math.tanh %187 : vector<8x32xf32>
    %189 = arith.select %57, %188, %184 : vector<8x32xi1>, vector<8x32xf32>
    %c40_113 = arith.constant 40 : index
    %c0_114 = arith.constant 0 : index
    %190 = vector.load %arg16[%c40_113, %c0_114] : memref<64x32xf32, #tpu.memory_space<vmem>>, vector<8x32xf32>
    %cst_115 = arith.constant dense<0.000000e+00> : vector<8x32xf32>
    %191 = tpu.matmul %189, %165, %cst_115 {dimension_numbers = #tpu.dot_dimension_numbers<[1], [0], [0], [1], [0, 0, 1, 1], [], []>} : vector<8x32xf32>, vector<32x32xf32>, vector<8x32xf32> -> vector<8x32xf32>
    %192 = arith.addf %190, %191 : vector<8x32xf32>
    %193 = math.tanh %192 : vector<8x32xf32>
    %194 = arith.select %59, %193, %189 : vector<8x32xi1>, vector<8x32xf32>
    %c48_116 = arith.constant 48 : index
    %c0_117 = arith.constant 0 : index
    %195 = vector.load %arg16[%c48_116, %c0_117] : memref<64x32xf32, #tpu.memory_space<vmem>>, vector<8x32xf32>
    %cst_118 = arith.constant dense<0.000000e+00> : vector<8x32xf32>
    %196 = tpu.matmul %194, %165, %cst_118 {dimension_numbers = #tpu.dot_dimension_numbers<[1], [0], [0], [1], [0, 0, 1, 1], [], []>} : vector<8x32xf32>, vector<32x32xf32>, vector<8x32xf32> -> vector<8x32xf32>
    %197 = arith.addf %195, %196 : vector<8x32xf32>
    %198 = math.tanh %197 : vector<8x32xf32>
    %199 = arith.select %61, %198, %194 : vector<8x32xi1>, vector<8x32xf32>
    %c56_119 = arith.constant 56 : index
    %c0_120 = arith.constant 0 : index
    %200 = vector.load %arg16[%c56_119, %c0_120] : memref<64x32xf32, #tpu.memory_space<vmem>>, vector<8x32xf32>
    %cst_121 = arith.constant dense<0.000000e+00> : vector<8x32xf32>
    %201 = tpu.matmul %199, %165, %cst_121 {dimension_numbers = #tpu.dot_dimension_numbers<[1], [0], [0], [1], [0, 0, 1, 1], [], []>} : vector<8x32xf32>, vector<32x32xf32>, vector<8x32xf32> -> vector<8x32xf32>
    %202 = arith.addf %200, %201 : vector<8x32xf32>
    %203 = math.tanh %202 : vector<8x32xf32>
    %204 = arith.select %63, %203, %199 : vector<8x32xi1>, vector<8x32xf32>
    %cst_122 = arith.constant 0.000000e+00 : f32
    %205 = vector.broadcast %cst_122 : f32 to vector<8x64xf32>
    %c0_123 = arith.constant 0 : index
    %c0_124 = arith.constant 0 : index
    %206 = vector.load %arg15[%c0_123, %c0_124] : memref<64x64xf32, #tpu.memory_space<vmem>>, vector<8x64xf32>
    %207 = arith.select %65, %206, %205 : vector<8x64xi1>, vector<8x64xf32>
    %c8_125 = arith.constant 8 : index
    %c0_126 = arith.constant 0 : index
    %208 = vector.load %arg15[%c8_125, %c0_126] : memref<64x64xf32, #tpu.memory_space<vmem>>, vector<8x64xf32>
    %209 = arith.select %67, %208, %207 : vector<8x64xi1>, vector<8x64xf32>
    %c16_127 = arith.constant 16 : index
    %c0_128 = arith.constant 0 : index
    %210 = vector.load %arg15[%c16_127, %c0_128] : memref<64x64xf32, #tpu.memory_space<vmem>>, vector<8x64xf32>
    %211 = arith.select %69, %210, %209 : vector<8x64xi1>, vector<8x64xf32>
    %c24_129 = arith.constant 24 : index
    %c0_130 = arith.constant 0 : index
    %212 = vector.load %arg15[%c24_129, %c0_130] : memref<64x64xf32, #tpu.memory_space<vmem>>, vector<8x64xf32>
    %213 = arith.select %71, %212, %211 : vector<8x64xi1>, vector<8x64xf32>
    %c32_131 = arith.constant 32 : index
    %c0_132 = arith.constant 0 : index
    %214 = vector.load %arg15[%c32_131, %c0_132] : memref<64x64xf32, #tpu.memory_space<vmem>>, vector<8x64xf32>
    %215 = arith.select %73, %214, %213 : vector<8x64xi1>, vector<8x64xf32>
    %c40_133 = arith.constant 40 : index
    %c0_134 = arith.constant 0 : index
    %216 = vector.load %arg15[%c40_133, %c0_134] : memref<64x64xf32, #tpu.memory_space<vmem>>, vector<8x64xf32>
    %217 = arith.select %75, %216, %215 : vector<8x64xi1>, vector<8x64xf32>
    %c48_135 = arith.constant 48 : index
    %c0_136 = arith.constant 0 : index
    %218 = vector.load %arg15[%c48_135, %c0_136] : memref<64x64xf32, #tpu.memory_space<vmem>>, vector<8x64xf32>
    %219 = arith.select %77, %218, %217 : vector<8x64xi1>, vector<8x64xf32>
    %c56_137 = arith.constant 56 : index
    %c0_138 = arith.constant 0 : index
    %220 = vector.load %arg15[%c56_137, %c0_138] : memref<64x64xf32, #tpu.memory_space<vmem>>, vector<8x64xf32>
    %221 = arith.select %79, %220, %219 : vector<8x64xi1>, vector<8x64xf32>
    %c0_139 = arith.constant 0 : index
    %c0_140 = arith.constant 0 : index
    %222 = vector.load %arg7[%c0_139, %c0_140] : memref<64x32xf32, #tpu.memory_space<vmem>>, vector<64x32xf32>
    %cst_141 = arith.constant dense<0.000000e+00> : vector<8x32xf32>
    %223 = tpu.matmul %221, %222, %cst_141 {dimension_numbers = #tpu.dot_dimension_numbers<[1], [0], [0], [1], [0, 0, 1, 1], [], []>} : vector<8x64xf32>, vector<64x32xf32>, vector<8x32xf32> -> vector<8x32xf32>
    %c0_142 = arith.constant 0 : index
    %c0_143 = arith.constant 0 : index
    %224 = vector.load %arg8[%c0_142, %c0_143] : memref<1x32xf32, #tpu.memory_space<vmem>>, vector<1x32xf32>
    %225 = vector.broadcast %224 : vector<1x32xf32> to vector<8x32xf32>
    %226 = arith.addf %223, %225 : vector<8x32xf32>
    %227 = math.tanh %226 : vector<8x32xf32>
    %c0_144 = arith.constant 0 : index
    %c0_145 = arith.constant 0 : index
    %228 = vector.load %arg10[%c0_144, %c0_145] : memref<32x4xf32, #tpu.memory_space<vmem>>, vector<32x4xf32>
    %cst_146 = arith.constant dense<0.000000e+00> : vector<8x4xf32>
    %229 = tpu.matmul %204, %228, %cst_146 {dimension_numbers = #tpu.dot_dimension_numbers<[1], [0], [0], [1], [0, 0, 1, 1], [], []>} : vector<8x32xf32>, vector<32x4xf32>, vector<8x4xf32> -> vector<8x4xf32>
    %c0_147 = arith.constant 0 : index
    %c0_148 = arith.constant 0 : index
    %230 = vector.load %arg11[%c0_147, %c0_148] : memref<32x4xf32, #tpu.memory_space<vmem>>, vector<32x4xf32>
    %cst_149 = arith.constant dense<0.000000e+00> : vector<8x4xf32>
    %231 = tpu.matmul %227, %230, %cst_149 {dimension_numbers = #tpu.dot_dimension_numbers<[1], [0], [0], [1], [0, 0, 1, 1], [], []>} : vector<8x32xf32>, vector<32x4xf32>, vector<8x4xf32> -> vector<8x4xf32>
    %232 = arith.addf %229, %231 : vector<8x4xf32>
    %c0_150 = arith.constant 0 : index
    %c0_151 = arith.constant 0 : index
    %233 = vector.load %arg12[%c0_150, %c0_151] : memref<1x4xf32, #tpu.memory_space<vmem>>, vector<1x4xf32>
    %234 = vector.broadcast %233 : vector<1x4xf32> to vector<8x4xf32>
    %235 = arith.addf %232, %234 : vector<8x4xf32>
    %c0_152 = arith.constant 0 : index
    %c0_153 = arith.constant 0 : index
    %236 = vector.load %arg13[%c0_152, %c0_153] : memref<8x4xf32, #tpu.memory_space<vmem>>, vector<8x4xf32>
    tpu.vector_store %arg13[%c0_152, %c0_153], %235 {strides = array<i32>} : memref<8x4xf32, #tpu.memory_space<vmem>>, vector<8x4xf32>,
    return
  }
}

</mosaic_0001>

<llo_original>
// kernel: tpu_custom_call.1
$region0: #{tpu_custom_call.1}
  #allocation0 [shape = 'u32[]', space=smem, size = 0x4, offset = 0x4, fixed_abs, tag = 'smem constant byte address 0x4 - core index']
  #allocation1 [shape = 'u32[144,128]{1,0:T(1,128)}', space=vmem, size = 0x12000, scoped, tag = 'internal scratch']
  #allocation2 [shape = 'f32[64,64]{1,0:T(8,128)}', space=vmem, size = 0x8000, scoped, tag = 'scratch operand']
  #allocation3 [shape = 'f32[64,64]{1,0:T(8,128)}', space=vmem, size = 0x8000, scoped, tag = 'scratch operand']
  #allocation4 [shape = 'f32[64,32]{1,0:T(8,128)}', space=vmem, size = 0x8000, scoped, tag = 'scratch operand']
  %s0 = inlined_call_operand.vmem [shape: s32[8,1], index: 0, kind: input, shape index: {}]
  %s1 = inlined_call_operand.vmem [shape: f32[64,32], index: 1, kind: input, shape index: {}]
  %s2 = inlined_call_operand.vmem [shape: f32[32,64], index: 2, kind: input, shape index: {}]
  %s3 = inlined_call_operand.vmem [shape: f32[1,64], index: 3, kind: input, shape index: {}]
  %s4 = inlined_call_operand.vmem [shape: f32[64,64], index: 4, kind: input, shape index: {}]
  %s5 = inlined_call_operand.vmem [shape: f32[64,32], index: 5, kind: input, shape index: {}]
  %s6 = inlined_call_operand.vmem [shape: f32[1,32], index: 6, kind: input, shape index: {}]
  %s7 = inlined_call_operand.vmem [shape: f32[64,32], index: 7, kind: input, shape index: {}]
  %s8 = inlined_call_operand.vmem [shape: f32[1,32], index: 8, kind: input, shape index: {}]
  %s9 = inlined_call_operand.vmem [shape: f32[32,32], index: 9, kind: input, shape index: {}]
  %s10 = inlined_call_operand.vmem [shape: f32[32,4], index: 10, kind: input, shape index: {}]
  %s11 = inlined_call_operand.vmem [shape: f32[32,4], index: 11, kind: input, shape index: {}]
  %s12 = inlined_call_operand.vmem [shape: f32[1,4], index: 12, kind: input, shape index: {}]
  %s13 = inlined_call_operand.vmem [shape: f32[8,4], index: 13, kind: output, shape index: {}]
  %s14 = sld [smem:[#allocation0]]
  $region62: #{tpu_custom_call.1} parent=0
    _
  %s16 = ssub.s32 1, %s14
  %s17 = scalar_select 0, %s16, %s14
  // Predicated region
  $region2: #{tpu_custom_call.1} parent=0 // pred_check
    _
  $region3: #{tpu_custom_call.1} parent=0 // pred_check_branch
    %19 = sbr.rel (0) target = $region5
  $region4: #{tpu_custom_call.1} parent=0 // pred_region
    _
  $region5: #{tpu_custom_call.1} parent=0 // pred_fallthru
    _
  // Predicated region
  $region6: #{tpu_custom_call.1} parent=0 // pred_check
    _
  $region7: #{tpu_custom_call.1} parent=0 // pred_check_branch
    %21 = sbr.rel (0) target = $region9
  $region8: #{tpu_custom_call.1} parent=0 // pred_region
    _
  $region9: #{tpu_custom_call.1} parent=0 // pred_fallthru
    _
  // Predicated region
  $region10: #{tpu_custom_call.1} parent=0 // pred_check
    _
  $region11: #{tpu_custom_call.1} parent=0 // pred_check_branch
    %23 = sbr.rel (0) target = $region13
  $region12: #{tpu_custom_call.1} parent=0 // pred_region
    _
  $region13: #{tpu_custom_call.1} parent=0 // pred_fallthru
    _
  // Predicated region
  $region14: #{tpu_custom_call.1} parent=0 // pred_check
    _
  $region15: #{tpu_custom_call.1} parent=0 // pred_check_branch
    %25 = sbr.rel (0) target = $region17
  $region16: #{tpu_custom_call.1} parent=0 // pred_region
    _
  $region17: #{tpu_custom_call.1} parent=0 // pred_fallthru
    _
  // Predicated region
  $region18: #{tpu_custom_call.1} parent=0 // pred_check
    _
  $region19: #{tpu_custom_call.1} parent=0 // pred_check_branch
    %27 = sbr.rel (0) target = $region21
  $region20: #{tpu_custom_call.1} parent=0 // pred_region
    _
  $region21: #{tpu_custom_call.1} parent=0 // pred_fallthru
    _
  // Predicated region
  $region22: #{tpu_custom_call.1} parent=0 // pred_check
    _
  $region23: #{tpu_custom_call.1} parent=0 // pred_check_branch
    %29 = sbr.rel (0) target = $region25
  $region24: #{tpu_custom_call.1} parent=0 // pred_region
    _
  $region25: #{tpu_custom_call.1} parent=0 // pred_fallthru
    _
  // Predicated region
  $region26: #{tpu_custom_call.1} parent=0 // pred_check
    _
  $region27: #{tpu_custom_call.1} parent=0 // pred_check_branch
    %31 = sbr.rel (0) target = $region29
  $region28: #{tpu_custom_call.1} parent=0 // pred_region
    _
  $region29: #{tpu_custom_call.1} parent=0 // pred_fallthru
    _
  // Predicated region
  $region30: #{tpu_custom_call.1} parent=0 // pred_check
    _
  $region31: #{tpu_custom_call.1} parent=0 // pred_check_branch
    %33 = sbr.rel (0) target = $region33
  $region32: #{tpu_custom_call.1} parent=0 // pred_region
    _
  $region33: #{tpu_custom_call.1} parent=0 // pred_fallthru
    _
  // Predicated region
  $region34: #{tpu_custom_call.1} parent=0 // pred_check
    _
  $region35: #{tpu_custom_call.1} parent=0 // pred_check_branch
    %35 = sbr.rel (0) target = $region37
  $region36: #{tpu_custom_call.1} parent=0 // pred_region
    _
  $region37: #{tpu_custom_call.1} parent=0 // pred_fallthru
    _
  // Predicated region
  $region38: #{tpu_custom_call.1} parent=0 // pred_check
    _
  $region39: #{tpu_custom_call.1} parent=0 // pred_check_branch
    %37 = sbr.rel (0) target = $region41
  $region40: #{tpu_custom_call.1} parent=0 // pred_region
    _
  $region41: #{tpu_custom_call.1} parent=0 // pred_fallthru
    _
  // Predicated region
  $region42: #{tpu_custom_call.1} parent=0 // pred_check
    _
  $region43: #{tpu_custom_call.1} parent=0 // pred_check_branch
    %39 = sbr.rel (0) target = $region45
  $region44: #{tpu_custom_call.1} parent=0 // pred_region
    _
  $region45: #{tpu_custom_call.1} parent=0 // pred_fallthru
    _
  // Predicated region
  $region46: #{tpu_custom_call.1} parent=0 // pred_check
    _
  $region47: #{tpu_custom_call.1} parent=0 // pred_check_branch
    %41 = sbr.rel (0) target = $region49
  $region48: #{tpu_custom_call.1} parent=0 // pred_region
    _
  $region49: #{tpu_custom_call.1} parent=0 // pred_fallthru
    _
  // Predicated region
  $region50: #{tpu_custom_call.1} parent=0 // pred_check
    _
  $region51: #{tpu_custom_call.1} parent=0 // pred_check_branch
    %43 = sbr.rel (0) target = $region53
  $region52: #{tpu_custom_call.1} parent=0 // pred_region
    _
  $region53: #{tpu_custom_call.1} parent=0 // pred_fallthru
    _
  %v44 = vld [vmem:[%s0] sm:$0xff]
  %v45 = vlaneseq
  %v46 = vand.u32 %v45, 127
  %47 = vset.pattern.permute.xlu0 0
  %48 = vperm.xlu0 %47, %v44
  %v49 = vpop.permute.xlu0 %48
  %vm50 = vcmp.lt.s32.totalorder %v46, 32
  %v51 = vsel %vm50, 0, 7
  %vm52 = vcmp.gt.s32.totalorder %v49, %v51
  %v53 = vsel %vm50, 1, 6
  %vm54 = vcmp.gt.s32.totalorder %v49, %v53
  %v55 = vsel %vm50, 2, 5
  %vm56 = vcmp.gt.s32.totalorder %v49, %v55
  %v57 = vsel %vm50, 3, 4
  %vm58 = vcmp.gt.s32.totalorder %v49, %v57
  %v59 = vsel %vm50, 4, 3
  %vm60 = vcmp.gt.s32.totalorder %v49, %v59
  %v61 = vsel %vm50, 5, 2
  %vm62 = vcmp.gt.s32.totalorder %v49, %v61
  %v63 = vsel %vm50, 6, 1
  %vm64 = vcmp.gt.s32.totalorder %v49, %v63
  %vm65 = vcmp.gt.s32.totalorder %v49, 0
  %vm66 = vcmp.gt.s32.totalorder %v49, 1
  %vm67 = vcmp.gt.s32.totalorder %v49, 2
  %vm68 = vcmp.gt.s32.totalorder %v49, 3
  %vm69 = vcmp.gt.s32.totalorder %v49, 4
  %vm70 = vcmp.gt.s32.totalorder %v49, 5
  %vm71 = vcmp.gt.s32.totalorder %v49, 6
  %vm72 = vcmp.gt.s32.totalorder %v49, 7
  %vm73 = vcmp.eq.s32.totalorder %v49, 1
  %vm74 = vcmp.eq.s32.totalorder %v49, 2
  %vm75 = vcmp.eq.s32.totalorder %v49, 3
  %vm76 = vcmp.eq.s32.totalorder %v49, 4
  %vm77 = vcmp.eq.s32.totalorder %v49, 5
  %vm78 = vcmp.eq.s32.totalorder %v49, 6
  %vm79 = vcmp.eq.s32.totalorder %v49, 7
  %vm80 = vcmp.eq.s32.totalorder %v49, 8
  %v81 = vld [vmem:[%s1] sm:$0xff]
  %v82 = vld [vmem:[%s1 + $0x8] sm:$0xff]
  %v83 = vld [vmem:[%s1 + $0x10] sm:$0xff]
  %v84 = vld [vmem:[%s1 + $0x18] sm:$0xff]
  %v85 = vld [vmem:[%s1 + $0x20] sm:$0xff]
  %v86 = vld [vmem:[%s1 + $0x28] sm:$0xff]
  %v87 = vld [vmem:[%s1 + $0x30] sm:$0xff]
  %v88 = vld [vmem:[%s1 + $0x38] sm:$0xff]
  %v89 = vld [vmem:[%s2] sm:$0xff]
  %v90 = vld [vmem:[%s2 + $0x8] sm:$0xff]
  %v91 = vld [vmem:[%s2 + $0x10] sm:$0xff]
  %v92 = vld [vmem:[%s2 + $0x18] sm:$0xff]
  %v93 = vld [vmem:[%s3] sm:$0x1]
  %v95 = vlaneseq
  %v96 = vshrl.u32 %v95, 7
  %v97 = vsub.s32 0, %v96
  %v98 = vrot.slane %v93, %v97
  %vm100 = vcmask 261120
  %v102 = vsel %vm100, %v81, 0
  %v105 = vsel %vm100, %v82, 0
  %v108 = vsel %vm100, %v83, 0
  %v111 = vsel %vm100, %v84, 0
  %v114 = vsel %vm100, %v85, 0
  %v117 = vsel %vm100, %v86, 0
  %v120 = vsel %vm100, %v87, 0
  %v123 = vsel %vm100, %v88, 0
  %125 = vmatprep.subr.mxu0 0.0
  %126 = vmatpush1.msra.mxu0 %v89
  %127 = vmatprep.subr.mxu0 0.0
  %128 = vmatpush1.msra.mxu0 %v90
  %129 = vmatprep.subr.mxu0 0.0
  %130 = vmatpush1.msra.mxu0 %v91
  %131 = vmatprep.subr.mxu0 0.0
  %132 = vmatpush1.msra.mxu0 %v92
  %133 = vmatprep.subr.mxu0 0.0
  %134 = vmatpush1.msra.mxu0 0.0
  %135 = vmatprep.subr.mxu0 0.0
  %136 = vmatpush1.msra.mxu0 0.0
  %137 = vmatprep.subr.mxu0 0.0
  %138 = vmatpush1.msra.mxu0 0.0
  %139 = vmatprep.subr.mxu0 0.0
  %140 = vmatpush1.msra.mxu0 0.0
  %141 = vmatprep.subr.mxu0 0.0
  %142 = vmatpush1.msra.mxu0 0.0
  %143 = vmatprep.subr.mxu0 0.0
  %144 = vmatpush1.msra.mxu0 0.0
  %145 = vmatprep.subr.mxu0 0.0
  %146 = vmatpush1.msra.mxu0 0.0
  %147 = vmatprep.subr.mxu0 0.0
  %148 = vmatpush1.msra.mxu0 0.0
  %149 = vmatprep.subr.mxu0 0.0
  %150 = vmatpush1.msra.mxu0 0.0
  %151 = vmatprep.subr.mxu0 0.0
  %152 = vmatpush1.msra.mxu0 0.0
  %153 = vmatprep.subr.mxu0 0.0
  %154 = vmatpush1.msra.mxu0 0.0
  %155 = vmatprep.subr.mxu0 0.0
  %156 = vmatpush1.msra.mxu0 0.0
  %157 = vmatprep.subr.mxu0 0.0
  %158 = vmatpush1.msra.mxu0 0.0
  %159 = vmatprep.subr.mxu0 0.0
  %160 = vmatpush1.msra.mxu0 0.0
  %161 = vmatprep.subr.mxu0 0.0
  %162 = vmatpush1.msra.mxu0 0.0
  %163 = vmatprep.subr.mxu0 0.0
  %164 = vmatpush1.msra.mxu0 0.0
  %165 = vmatprep.subr.mxu0 0.0
  %166 = vmatpush1.msra.mxu0 0.0
  %167 = vmatprep.subr.mxu0 0.0
  %168 = vmatpush1.msra.mxu0 0.0
  %169 = vmatprep.subr.mxu0 0.0
  %170 = vmatpush1.msra.mxu0 0.0
  %171 = vmatprep.subr.mxu0 0.0
  %172 = vmatpush1.msra.mxu0 0.0
  %173 = vmatprep.subr.mxu0 0.0
  %174 = vmatpush1.msra.mxu0 0.0
  %175 = vmatprep.subr.mxu0 0.0
  %176 = vmatpush1.msra.mxu0 0.0
  %177 = vmatprep.subr.mxu0 0.0
  %178 = vmatpush1.msra.mxu0 0.0
  %179 = vmatprep.subr.mxu0 0.0
  %180 = vmatpush1.msra.mxu0 0.0
  %181 = vmatprep.subr.mxu0 0.0
  %182 = vmatpush1.msra.mxu0 0.0
  %183 = vmatprep.subr.mxu0 0.0
  %184 = vmatpush1.msra.mxu0 0.0
  %185 = vmatprep.subr.mxu0 0.0
  %186 = vmatpush1.msra.mxu0 0.0
  %187 = vmatprep.subr.mxu0 0.0
  %188 = vmatpush1.msra.mxu0 0.0
  %189 = vmatprep.mubr.f32.mxu0 0.0
  %190 = vmatmul.mubr.f32.gmra.mrb[0].mxu0 %v102
  %v191 = vpop.f32.mrb[0].mxu0
  %v192 = vadd.f32 %v98, %v191
  %v193 = vpop.f32.mrb[0].mxu0
  %194 = vmatprep.mubr.f32.mxu0 0.0
  %195 = vmatmul.mubr.f32.gmra.mrb[0].mxu0 %v105
  %v196 = vpop.f32.mrb[0].mxu0
  %v197 = vadd.f32 %v98, %v196
  %v198 = vpop.f32.mrb[0].mxu0
  %199 = vmatprep.mubr.f32.mxu0 0.0
  %200 = vmatmul.mubr.f32.gmra.mrb[0].mxu0 %v108
  %v201 = vpop.f32.mrb[0].mxu0
  %v202 = vadd.f32 %v98, %v201
  %v203 = vpop.f32.mrb[0].mxu0
  %204 = vmatprep.mubr.f32.mxu0 0.0
  %205 = vmatmul.mubr.f32.gmra.mrb[0].mxu0 %v111
  %v206 = vpop.f32.mrb[0].mxu0
  %v207 = vadd.f32 %v98, %v206
  %v208 = vpop.f32.mrb[0].mxu0
  %209 = vmatprep.mubr.f32.mxu0 0.0
  %210 = vmatmul.mubr.f32.gmra.mrb[0].mxu0 %v114
  %v211 = vpop.f32.mrb[0].mxu0
  %v212 = vadd.f32 %v98, %v211
  %v213 = vpop.f32.mrb[0].mxu0
  %214 = vmatprep.mubr.f32.mxu0 0.0
  %215 = vmatmul.mubr.f32.gmra.mrb[0].mxu0 %v117
  %v216 = vpop.f32.mrb[0].mxu0
  %v217 = vadd.f32 %v98, %v216
  %v218 = vpop.f32.mrb[0].mxu0
  %219 = vmatprep.mubr.f32.mxu0 0.0
  %220 = vmatmul.mubr.f32.gmra.mrb[0].mxu0 %v120
  %v221 = vpop.f32.mrb[0].mxu0
  %v222 = vadd.f32 %v98, %v221
  %v223 = vpop.f32.mrb[0].mxu0
  %224 = vmatprep.mubr.f32.mxu0 0.0
  %225 = vmatmul.mubr.f32.gmra.mrb[0].mxu0 %v123
  %v226 = vpop.f32.mrb[0].mxu0
  %v227 = vadd.f32 %v98, %v226
  %v228 = vpop.f32.mrb[0].mxu0
  %229 = vdwg.mxu0
  %vm230 = vcmask 523264
  %231 = vst.msk [vmem:[#allocation2] sm:$0xff] %vm230, %v192
  %232 = vst.msk [vmem:[#allocation2 + $0x8] sm:$0xff] %vm230, %v197
  %233 = vst.msk [vmem:[#allocation2 + $0x10] sm:$0xff] %vm230, %v202
  %234 = vst.msk [vmem:[#allocation2 + $0x18] sm:$0xff] %vm230, %v207
  %235 = vst.msk [vmem:[#allocation2 + $0x20] sm:$0xff] %vm230, %v212
  %236 = vst.msk [vmem:[#allocation2 + $0x28] sm:$0xff] %vm230, %v217
  %237 = vst.msk [vmem:[#allocation2 + $0x30] sm:$0xff] %vm230, %v222
  %238 = vst.msk [vmem:[#allocation2 + $0x38] sm:$0xff] %vm230, %v227
  %v239 = vld [vmem:[%s4] sm:$0xff]
  %v240 = vld [vmem:[%s4 + $0x8] sm:$0xff]
  %v241 = vld [vmem:[%s4 + $0x10] sm:$0xff]
  %v242 = vld [vmem:[%s4 + $0x18] sm:$0xff]
  %v243 = vld [vmem:[%s4 + $0x20] sm:$0xff]
  %v244 = vld [vmem:[%s4 + $0x28] sm:$0xff]
  %v245 = vld [vmem:[%s4 + $0x30] sm:$0xff]
  %v246 = vld [vmem:[%s4 + $0x38] sm:$0xff]
  %v247 = vld [vmem:[#allocation2] sm:$0xff]
  %v248 = vtanh.pop %v247
  %249 = vst.msk [vmem:[#allocation3] sm:$0xff] %vm100, %v248
  %vm250 = vcmask 523520
  %251 = vst.msk [vmem:[#allocation3 + $0x38] sm:$0xff] %vm250, %v248
  %v252 = vsel %vm52, %v248, 0.0
  %v253 = vld [vmem:[#allocation2 + $0x8] sm:$0xff]
  %v255 = vsel %vm230, %v252, 0
  %257 = vmatprep.subr.mxu0 0.0
  %258 = vmatpush1.msra.mxu0 %v239
  %259 = vmatprep.subr.mxu0 0.0
  %260 = vmatpush1.msra.mxu0 %v240
  %261 = vmatprep.subr.mxu0 0.0
  %262 = vmatpush1.msra.mxu0 %v241
  %263 = vmatprep.subr.mxu0 0.0
  %264 = vmatpush1.msra.mxu0 %v242
  %265 = vmatprep.subr.mxu0 0.0
  %266 = vmatpush1.msra.mxu0 %v243
  %267 = vmatprep.subr.mxu0 0.0
  %268 = vmatpush1.msra.mxu0 %v244
  %269 = vmatprep.subr.mxu0 0.0
  %270 = vmatpush1.msra.mxu0 %v245
  %271 = vmatprep.subr.mxu0 0.0
  %272 = vmatpush1.msra.mxu0 %v246
  %273 = vmatprep.subr.mxu0 0.0
  %274 = vmatpush1.msra.mxu0 0.0
  %275 = vmatprep.subr.mxu0 0.0
  %276 = vmatpush1.msra.mxu0 0.0
  %277 = vmatprep.subr.mxu0 0.0
  %278 = vmatpush1.msra.mxu0 0.0
  %279 = vmatprep.subr.mxu0 0.0
  %280 = vmatpush1.msra.mxu0 0.0
  %281 = vmatprep.subr.mxu0 0.0
  %282 = vmatpush1.msra.mxu0 0.0
  %283 = vmatprep.subr.mxu0 0.0
  %284 = vmatpush1.msra.mxu0 0.0
  %285 = vmatprep.subr.mxu0 0.0
  %286 = vmatpush1.msra.mxu0 0.0
  %287 = vmatprep.subr.mxu0 0.0
  %288 = vmatpush1.msra.mxu0 0.0
  %289 = vmatprep.subr.mxu0 0.0
  %290 = vmatpush1.msra.mxu0 0.0
  %291 = vmatprep.subr.mxu0 0.0
  %292 = vmatpush1.msra.mxu0 0.0
  %293 = vmatprep.subr.mxu0 0.0
  %294 = vmatpush1.msra.mxu0 0.0
  %295 = vmatprep.subr.mxu0 0.0
  %296 = vmatpush1.msra.mxu0 0.0
  %297 = vmatprep.subr.mxu0 0.0
  %298 = vmatpush1.msra.mxu0 0.0
  %299 = vmatprep.subr.mxu0 0.0
  %300 = vmatpush1.msra.mxu0 0.0
  %301 = vmatprep.subr.mxu0 0.0
  %302 = vmatpush1.msra.mxu0 0.0
  %303 = vmatprep.subr.mxu0 0.0
  %304 = vmatpush1.msra.mxu0 0.0
  %305 = vmatprep.subr.mxu0 0.0
  %306 = vmatpush1.msra.mxu0 0.0
  %307 = vmatprep.subr.mxu0 0.0
  %308 = vmatpush1.msra.mxu0 0.0
  %309 = vmatprep.subr.mxu0 0.0
  %310 = vmatpush1.msra.mxu0 0.0
  %311 = vmatprep.subr.mxu0 0.0
  %312 = vmatpush1.msra.mxu0 0.0
  %313 = vmatprep.subr.mxu0 0.0
  %314 = vmatpush1.msra.mxu0 0.0
  %315 = vmatprep.subr.mxu0 0.0
  %316 = vmatpush1.msra.mxu0 0.0
  %317 = vmatprep.subr.mxu0 0.0
  %318 = vmatpush1.msra.mxu0 0.0
  %319 = vmatprep.subr.mxu0 0.0
  %320 = vmatpush1.msra.mxu0 0.0
  %321 = vmatprep.mubr.f32.mxu0 0.0
  %322 = vmatmul.mubr.f32.gmra.mrb[0].mxu0 %v255
  %v323 = vpop.f32.mrb[0].mxu0
  %v324 = vadd.f32 0.0, %v323
  %v325 = vpop.f32.mrb[0].mxu0
  %326 = vdwg.mxu0
  %v327 = vadd.f32 %v253, %v324
  %v328 = vtanh.pop %v327
  %329 = vst.msk [vmem:[#allocation3 + $0x8] sm:$0xff] %vm100, %v328
  %330 = vst.msk [vmem:[#allocation3 + $0x30] sm:$0xff] %vm250, %v328
  %v331 = vsel %vm54, %v328, %v252
  %v332 = vld [vmem:[#allocation2 + $0x10] sm:$0xff]
  %v334 = vsel %vm230, %v331, 0
  %336 = vmatprep.subr.mxu0 0.0
  %337 = vmatpush1.msra.mxu0 %v239
  %338 = vmatprep.subr.mxu0 0.0
  %339 = vmatpush1.msra.mxu0 %v240
  %340 = vmatprep.subr.mxu0 0.0
  %341 = vmatpush1.msra.mxu0 %v241
  %342 = vmatprep.subr.mxu0 0.0
  %343 = vmatpush1.msra.mxu0 %v242
  %344 = vmatprep.subr.mxu0 0.0
  %345 = vmatpush1.msra.mxu0 %v243
  %346 = vmatprep.subr.mxu0 0.0
  %347 = vmatpush1.msra.mxu0 %v244
  %348 = vmatprep.subr.mxu0 0.0
  %349 = vmatpush1.msra.mxu0 %v245
  %350 = vmatprep.subr.mxu0 0.0
  %351 = vmatpush1.msra.mxu0 %v246
  %352 = vmatprep.subr.mxu0 0.0
  %353 = vmatpush1.msra.mxu0 0.0
  %354 = vmatprep.subr.mxu0 0.0
  %355 = vmatpush1.msra.mxu0 0.0
  %356 = vmatprep.subr.mxu0 0.0
  %357 = vmatpush1.msra.mxu0 0.0
  %358 = vmatprep.subr.mxu0 0.0
  %359 = vmatpush1.msra.mxu0 0.0
  %360 = vmatprep.subr.mxu0 0.0
  %361 = vmatpush1.msra.mxu0 0.0
  %362 = vmatprep.subr.mxu0 0.0
  %363 = vmatpush1.msra.mxu0 0.0
  %364 = vmatprep.subr.mxu0 0.0
  %365 = vmatpush1.msra.mxu0 0.0
  %366 = vmatprep.subr.mxu0 0.0
  %367 = vmatpush1.msra.mxu0 0.0
  %368 = vmatprep.subr.mxu0 0.0
  %369 = vmatpush1.msra.mxu0 0.0
  %370 = vmatprep.subr.mxu0 0.0
  %371 = vmatpush1.msra.mxu0 0.0
  %372 = vmatprep.subr.mxu0 0.0
  %373 = vmatpush1.msra.mxu0 0.0
  %374 = vmatprep.subr.mxu0 0.0
  %375 = vmatpush1.msra.mxu0 0.0
  %376 = vmatprep.subr.mxu0 0.0
  %377 = vmatpush1.msra.mxu0 0.0
  %378 = vmatprep.subr.mxu0 0.0
  %379 = vmatpush1.msra.mxu0 0.0
  %380 = vmatprep.subr.mxu0 0.0
  %381 = vmatpush1.msra.mxu0 0.0
  %382 = vmatprep.subr.mxu0 0.0
  %383 = vmatpush1.msra.mxu0 0.0
  %384 = vmatprep.subr.mxu0 0.0
  %385 = vmatpush1.msra.mxu0 0.0
  %386 = vmatprep.subr.mxu0 0.0
  %387 = vmatpush1.msra.mxu0 0.0
  %388 = vmatprep.subr.mxu0 0.0
  %389 = vmatpush1.msra.mxu0 0.0
  %390 = vmatprep.subr.mxu0 0.0
  %391 = vmatpush1.msra.mxu0 0.0
  %392 = vmatprep.subr.mxu0 0.0
  %393 = vmatpush1.msra.mxu0 0.0
  %394 = vmatprep.subr.mxu0 0.0
  %395 = vmatpush1.msra.mxu0 0.0
  %396 = vmatprep.subr.mxu0 0.0
  %397 = vmatpush1.msra.mxu0 0.0
  %398 = vmatprep.subr.mxu0 0.0
  %399 = vmatpush1.msra.mxu0 0.0
  %400 = vmatprep.mubr.f32.mxu0 0.0
  %401 = vmatmul.mubr.f32.gmra.mrb[0].mxu0 %v334
  %v402 = vpop.f32.mrb[0].mxu0
  %v403 = vadd.f32 0.0, %v402
  %v404 = vpop.f32.mrb[0].mxu0
  %405 = vdwg.mxu0
  %v406 = vadd.f32 %v332, %v403
  %v407 = vtanh.pop %v406
  %408 = vst.msk [vmem:[#allocation3 + $0x10] sm:$0xff] %vm100, %v407
  %409 = vst.msk [vmem:[#allocation3 + $0x28] sm:$0xff] %vm250, %v407
  %v410 = vsel %vm56, %v407, %v331
  %v411 = vld [vmem:[#allocation2 + $0x18] sm:$0xff]
  %v413 = vsel %vm230, %v410, 0
  %415 = vmatprep.subr.mxu0 0.0
  %416 = vmatpush1.msra.mxu0 %v239
  %417 = vmatprep.subr.mxu0 0.0
  %418 = vmatpush1.msra.mxu0 %v240
  %419 = vmatprep.subr.mxu0 0.0
  %420 = vmatpush1.msra.mxu0 %v241
  %421 = vmatprep.subr.mxu0 0.0
  %422 = vmatpush1.msra.mxu0 %v242
  %423 = vmatprep.subr.mxu0 0.0
  %424 = vmatpush1.msra.mxu0 %v243
  %425 = vmatprep.subr.mxu0 0.0
  %426 = vmatpush1.msra.mxu0 %v244
  %427 = vmatprep.subr.mxu0 0.0
  %428 = vmatpush1.msra.mxu0 %v245
  %429 = vmatprep.subr.mxu0 0.0
  %430 = vmatpush1.msra.mxu0 %v246
  %431 = vmatprep.subr.mxu0 0.0
  %432 = vmatpush1.msra.mxu0 0.0
  %433 = vmatprep.subr.mxu0 0.0
  %434 = vmatpush1.msra.mxu0 0.0
  %435 = vmatprep.subr.mxu0 0.0
  %436 = vmatpush1.msra.mxu0 0.0
  %437 = vmatprep.subr.mxu0 0.0
  %438 = vmatpush1.msra.mxu0 0.0
  %439 = vmatprep.subr.mxu0 0.0
  %440 = vmatpush1.msra.mxu0 0.0
  %441 = vmatprep.subr.mxu0 0.0
  %442 = vmatpush1.msra.mxu0 0.0
  %443 = vmatprep.subr.mxu0 0.0
  %444 = vmatpush1.msra.mxu0 0.0
  %445 = vmatprep.subr.mxu0 0.0
  %446 = vmatpush1.msra.mxu0 0.0
  %447 = vmatprep.subr.mxu0 0.0
  %448 = vmatpush1.msra.mxu0 0.0
  %449 = vmatprep.subr.mxu0 0.0
  %450 = vmatpush1.msra.mxu0 0.0
  %451 = vmatprep.subr.mxu0 0.0
  %452 = vmatpush1.msra.mxu0 0.0
  %453 = vmatprep.subr.mxu0 0.0
  %454 = vmatpush1.msra.mxu0 0.0
  %455 = vmatprep.subr.mxu0 0.0
  %456 = vmatpush1.msra.mxu0 0.0
  %457 = vmatprep.subr.mxu0 0.0
  %458 = vmatpush1.msra.mxu0 0.0
  %459 = vmatprep.subr.mxu0 0.0
  %460 = vmatpush1.msra.mxu0 0.0
  %461 = vmatprep.subr.mxu0 0.0
  %462 = vmatpush1.msra.mxu0 0.0
  %463 = vmatprep.subr.mxu0 0.0
  %464 = vmatpush1.msra.mxu0 0.0
  %465 = vmatprep.subr.mxu0 0.0
  %466 = vmatpush1.msra.mxu0 0.0
  %467 = vmatprep.subr.mxu0 0.0
  %468 = vmatpush1.msra.mxu0 0.0
  %469 = vmatprep.subr.mxu0 0.0
  %470 = vmatpush1.msra.mxu0 0.0
  %471 = vmatprep.subr.mxu0 0.0
  %472 = vmatpush1.msra.mxu0 0.0
  %473 = vmatprep.subr.mxu0 0.0
  %474 = vmatpush1.msra.mxu0 0.0
  %475 = vmatprep.subr.mxu0 0.0
  %476 = vmatpush1.msra.mxu0 0.0
  %477 = vmatprep.subr.mxu0 0.0
  %478 = vmatpush1.msra.mxu0 0.0
  %479 = vmatprep.mubr.f32.mxu0 0.0
  %480 = vmatmul.mubr.f32.gmra.mrb[0].mxu0 %v413
  %v481 = vpop.f32.mrb[0].mxu0
  %v482 = vadd.f32 0.0, %v481
  %v483 = vpop.f32.mrb[0].mxu0
  %484 = vdwg.mxu0
  %v485 = vadd.f32 %v411, %v482
  %v486 = vtanh.pop %v485
  %487 = vst.msk [vmem:[#allocation3 + $0x18] sm:$0xff] %vm100, %v486
  %488 = vst.msk [vmem:[#allocation3 + $0x20] sm:$0xff] %vm250, %v486
  %v489 = vsel %vm58, %v486, %v410
  %v490 = vld [vmem:[#allocation2 + $0x20] sm:$0xff]
  %v492 = vsel %vm230, %v489, 0
  %494 = vmatprep.subr.mxu0 0.0
  %495 = vmatpush1.msra.mxu0 %v239
  %496 = vmatprep.subr.mxu0 0.0
  %497 = vmatpush1.msra.mxu0 %v240
  %498 = vmatprep.subr.mxu0 0.0
  %499 = vmatpush1.msra.mxu0 %v241
  %500 = vmatprep.subr.mxu0 0.0
  %501 = vmatpush1.msra.mxu0 %v242
  %502 = vmatprep.subr.mxu0 0.0
  %503 = vmatpush1.msra.mxu0 %v243
  %504 = vmatprep.subr.mxu0 0.0
  %505 = vmatpush1.msra.mxu0 %v244
  %506 = vmatprep.subr.mxu0 0.0
  %507 = vmatpush1.msra.mxu0 %v245
  %508 = vmatprep.subr.mxu0 0.0
  %509 = vmatpush1.msra.mxu0 %v246
  %510 = vmatprep.subr.mxu0 0.0
  %511 = vmatpush1.msra.mxu0 0.0
  %512 = vmatprep.subr.mxu0 0.0
  %513 = vmatpush1.msra.mxu0 0.0
  %514 = vmatprep.subr.mxu0 0.0
  %515 = vmatpush1.msra.mxu0 0.0
  %516 = vmatprep.subr.mxu0 0.0
  %517 = vmatpush1.msra.mxu0 0.0
  %518 = vmatprep.subr.mxu0 0.0
  %519 = vmatpush1.msra.mxu0 0.0
  %520 = vmatprep.subr.mxu0 0.0
  %521 = vmatpush1.msra.mxu0 0.0
  %522 = vmatprep.subr.mxu0 0.0
  %523 = vmatpush1.msra.mxu0 0.0
  %524 = vmatprep.subr.mxu0 0.0
  %525 = vmatpush1.msra.mxu0 0.0
  %526 = vmatprep.subr.mxu0 0.0
  %527 = vmatpush1.msra.mxu0 0.0
  %528 = vmatprep.subr.mxu0 0.0
  %529 = vmatpush1.msra.mxu0 0.0
  %530 = vmatprep.subr.mxu0 0.0
  %531 = vmatpush1.msra.mxu0 0.0
  %532 = vmatprep.subr.mxu0 0.0
  %533 = vmatpush1.msra.mxu0 0.0
  %534 = vmatprep.subr.mxu0 0.0
  %535 = vmatpush1.msra.mxu0 0.0
  %536 = vmatprep.subr.mxu0 0.0
  %537 = vmatpush1.msra.mxu0 0.0
  %538 = vmatprep.subr.mxu0 0.0
  %539 = vmatpush1.msra.mxu0 0.0
  %540 = vmatprep.subr.mxu0 0.0
  %541 = vmatpush1.msra.mxu0 0.0
  %542 = vmatprep.subr.mxu0 0.0
  %543 = vmatpush1.msra.mxu0 0.0
  %544 = vmatprep.subr.mxu0 0.0
  %545 = vmatpush1.msra.mxu0 0.0
  %546 = vmatprep.subr.mxu0 0.0
  %547 = vmatpush1.msra.mxu0 0.0
  %548 = vmatprep.subr.mxu0 0.0
  %549 = vmatpush1.msra.mxu0 0.0
  %550 = vmatprep.subr.mxu0 0.0
  %551 = vmatpush1.msra.mxu0 0.0
  %552 = vmatprep.subr.mxu0 0.0
  %553 = vmatpush1.msra.mxu0 0.0
  %554 = vmatprep.subr.mxu0 0.0
  %555 = vmatpush1.msra.mxu0 0.0
  %556 = vmatprep.subr.mxu0 0.0
  %557 = vmatpush1.msra.mxu0 0.0
  %558 = vmatprep.mubr.f32.mxu0 0.0
  %559 = vmatmul.mubr.f32.gmra.mrb[0].mxu0 %v492
  %v560 = vpop.f32.mrb[0].mxu0
  %v561 = vadd.f32 0.0, %v560
  %v562 = vpop.f32.mrb[0].mxu0
  %563 = vdwg.mxu0
  %v564 = vadd.f32 %v490, %v561
  %v565 = vtanh.pop %v564
  %566 = vst.msk [vmem:[#allocation3 + $0x20] sm:$0xff] %vm100, %v565
  %567 = vst.msk [vmem:[#allocation3 + $0x18] sm:$0xff] %vm250, %v565
  %v568 = vsel %vm60, %v565, %v489
  %v569 = vld [vmem:[#allocation2 + $0x28] sm:$0xff]
  %v571 = vsel %vm230, %v568, 0
  %573 = vmatprep.subr.mxu0 0.0
  %574 = vmatpush1.msra.mxu0 %v239
  %575 = vmatprep.subr.mxu0 0.0
  %576 = vmatpush1.msra.mxu0 %v240
  %577 = vmatprep.subr.mxu0 0.0
  %578 = vmatpush1.msra.mxu0 %v241
  %579 = vmatprep.subr.mxu0 0.0
  %580 = vmatpush1.msra.mxu0 %v242
  %581 = vmatprep.subr.mxu0 0.0
  %582 = vmatpush1.msra.mxu0 %v243
  %583 = vmatprep.subr.mxu0 0.0
  %584 = vmatpush1.msra.mxu0 %v244
  %585 = vmatprep.subr.mxu0 0.0
  %586 = vmatpush1.msra.mxu0 %v245
  %587 = vmatprep.subr.mxu0 0.0
  %588 = vmatpush1.msra.mxu0 %v246
  %589 = vmatprep.subr.mxu0 0.0
  %590 = vmatpush1.msra.mxu0 0.0
  %591 = vmatprep.subr.mxu0 0.0
  %592 = vmatpush1.msra.mxu0 0.0
  %593 = vmatprep.subr.mxu0 0.0
  %594 = vmatpush1.msra.mxu0 0.0
  %595 = vmatprep.subr.mxu0 0.0
  %596 = vmatpush1.msra.mxu0 0.0
  %597 = vmatprep.subr.mxu0 0.0
  %598 = vmatpush1.msra.mxu0 0.0
  %599 = vmatprep.subr.mxu0 0.0
  %600 = vmatpush1.msra.mxu0 0.0
  %601 = vmatprep.subr.mxu0 0.0
  %602 = vmatpush1.msra.mxu0 0.0
  %603 = vmatprep.subr.mxu0 0.0
  %604 = vmatpush1.msra.mxu0 0.0
  %605 = vmatprep.subr.mxu0 0.0
  %606 = vmatpush1.msra.mxu0 0.0
  %607 = vmatprep.subr.mxu0 0.0
  %608 = vmatpush1.msra.mxu0 0.0
  %609 = vmatprep.subr.mxu0 0.0
  %610 = vmatpush1.msra.mxu0 0.0
  %611 = vmatprep.subr.mxu0 0.0
  %612 = vmatpush1.msra.mxu0 0.0
  %613 = vmatprep.subr.mxu0 0.0
  %614 = vmatpush1.msra.mxu0 0.0
  %615 = vmatprep.subr.mxu0 0.0
  %616 = vmatpush1.msra.mxu0 0.0
  %617 = vmatprep.subr.mxu0 0.0
  %618 = vmatpush1.msra.mxu0 0.0
  %619 = vmatprep.subr.mxu0 0.0
  %620 = vmatpush1.msra.mxu0 0.0
  %621 = vmatprep.subr.mxu0 0.0
  %622 = vmatpush1.msra.mxu0 0.0
  %623 = vmatprep.subr.mxu0 0.0
  %624 = vmatpush1.msra.mxu0 0.0
  %625 = vmatprep.subr.mxu0 0.0
  %626 = vmatpush1.msra.mxu0 0.0
  %627 = vmatprep.subr.mxu0 0.0
  %628 = vmatpush1.msra.mxu0 0.0
  %629 = vmatprep.subr.mxu0 0.0
  %630 = vmatpush1.msra.mxu0 0.0
  %631 = vmatprep.subr.mxu0 0.0
  %632 = vmatpush1.msra.mxu0 0.0
  %633 = vmatprep.subr.mxu0 0.0
  %634 = vmatpush1.msra.mxu0 0.0
  %635 = vmatprep.subr.mxu0 0.0
  %636 = vmatpush1.msra.mxu0 0.0
  %637 = vmatprep.mubr.f32.mxu0 0.0
  %638 = vmatmul.mubr.f32.gmra.mrb[0].mxu0 %v571
  %v639 = vpop.f32.mrb[0].mxu0
  %v640 = vadd.f32 0.0, %v639
  %v641 = vpop.f32.mrb[0].mxu0
  %642 = vdwg.mxu0
  %v643 = vadd.f32 %v569, %v640
  %v644 = vtanh.pop %v643
  %645 = vst.msk [vmem:[#allocation3 + $0x28] sm:$0xff] %vm100, %v644
  %646 = vst.msk [vmem:[#allocation3 + $0x10] sm:$0xff] %vm250, %v644
  %v647 = vsel %vm62, %v644, %v568
  %v648 = vld [vmem:[#allocation2 + $0x30] sm:$0xff]
  %v650 = vsel %vm230, %v647, 0
  %652 = vmatprep.subr.mxu0 0.0
  %653 = vmatpush1.msra.mxu0 %v239
  %654 = vmatprep.subr.mxu0 0.0
  %655 = vmatpush1.msra.mxu0 %v240
  %656 = vmatprep.subr.mxu0 0.0
  %657 = vmatpush1.msra.mxu0 %v241
  %658 = vmatprep.subr.mxu0 0.0
  %659 = vmatpush1.msra.mxu0 %v242
  %660 = vmatprep.subr.mxu0 0.0
  %661 = vmatpush1.msra.mxu0 %v243
  %662 = vmatprep.subr.mxu0 0.0
  %663 = vmatpush1.msra.mxu0 %v244
  %664 = vmatprep.subr.mxu0 0.0
  %665 = vmatpush1.msra.mxu0 %v245
  %666 = vmatprep.subr.mxu0 0.0
  %667 = vmatpush1.msra.mxu0 %v246
  %668 = vmatprep.subr.mxu0 0.0
  %669 = vmatpush1.msra.mxu0 0.0
  %670 = vmatprep.subr.mxu0 0.0
  %671 = vmatpush1.msra.mxu0 0.0
  %672 = vmatprep.subr.mxu0 0.0
  %673 = vmatpush1.msra.mxu0 0.0
  %674 = vmatprep.subr.mxu0 0.0
  %675 = vmatpush1.msra.mxu0 0.0
  %676 = vmatprep.subr.mxu0 0.0
  %677 = vmatpush1.msra.mxu0 0.0
  %678 = vmatprep.subr.mxu0 0.0
  %679 = vmatpush1.msra.mxu0 0.0
  %680 = vmatprep.subr.mxu0 0.0
  %681 = vmatpush1.msra.mxu0 0.0
  %682 = vmatprep.subr.mxu0 0.0
  %683 = vmatpush1.msra.mxu0 0.0
  %684 = vmatprep.subr.mxu0 0.0
  %685 = vmatpush1.msra.mxu0 0.0
  %686 = vmatprep.subr.mxu0 0.0
  %687 = vmatpush1.msra.mxu0 0.0
  %688 = vmatprep.subr.mxu0 0.0
  %689 = vmatpush1.msra.mxu0 0.0
  %690 = vmatprep.subr.mxu0 0.0
  %691 = vmatpush1.msra.mxu0 0.0
  %692 = vmatprep.subr.mxu0 0.0
  %693 = vmatpush1.msra.mxu0 0.0
  %694 = vmatprep.subr.mxu0 0.0
  %695 = vmatpush1.msra.mxu0 0.0
  %696 = vmatprep.subr.mxu0 0.0
  %697 = vmatpush1.msra.mxu0 0.0
  %698 = vmatprep.subr.mxu0 0.0
  %699 = vmatpush1.msra.mxu0 0.0
  %700 = vmatprep.subr.mxu0 0.0
  %701 = vmatpush1.msra.mxu0 0.0
  %702 = vmatprep.subr.mxu0 0.0
  %703 = vmatpush1.msra.mxu0 0.0
  %704 = vmatprep.subr.mxu0 0.0
  %705 = vmatpush1.msra.mxu0 0.0
  %706 = vmatprep.subr.mxu0 0.0
  %707 = vmatpush1.msra.mxu0 0.0
  %708 = vmatprep.subr.mxu0 0.0
  %709 = vmatpush1.msra.mxu0 0.0
  %710 = vmatprep.subr.mxu0 0.0
  %711 = vmatpush1.msra.mxu0 0.0
  %712 = vmatprep.subr.mxu0 0.0
  %713 = vmatpush1.msra.mxu0 0.0
  %714 = vmatprep.subr.mxu0 0.0
  %715 = vmatpush1.msra.mxu0 0.0
  %716 = vmatprep.mubr.f32.mxu0 0.0
  %717 = vmatmul.mubr.f32.gmra.mrb[0].mxu0 %v650
  %v718 = vpop.f32.mrb[0].mxu0
  %v719 = vadd.f32 0.0, %v718
  %v720 = vpop.f32.mrb[0].mxu0
  %721 = vdwg.mxu0
  %v722 = vadd.f32 %v648, %v719
  %v723 = vtanh.pop %v722
  %724 = vst.msk [vmem:[#allocation3 + $0x30] sm:$0xff] %vm100, %v723
  %725 = vst.msk [vmem:[#allocation3 + $0x8] sm:$0xff] %vm250, %v723
  %v726 = vsel %vm64, %v723, %v647
  %v727 = vld [vmem:[#allocation2 + $0x38] sm:$0xff]
  %v729 = vsel %vm230, %v726, 0
  %731 = vmatprep.subr.mxu0 0.0
  %732 = vmatpush1.msra.mxu0 %v239
  %733 = vmatprep.subr.mxu0 0.0
  %734 = vmatpush1.msra.mxu0 %v240
  %735 = vmatprep.subr.mxu0 0.0
  %736 = vmatpush1.msra.mxu0 %v241
  %737 = vmatprep.subr.mxu0 0.0
  %738 = vmatpush1.msra.mxu0 %v242
  %739 = vmatprep.subr.mxu0 0.0
  %740 = vmatpush1.msra.mxu0 %v243
  %741 = vmatprep.subr.mxu0 0.0
  %742 = vmatpush1.msra.mxu0 %v244
  %743 = vmatprep.subr.mxu0 0.0
  %744 = vmatpush1.msra.mxu0 %v245
  %745 = vmatprep.subr.mxu0 0.0
  %746 = vmatpush1.msra.mxu0 %v246
  %747 = vmatprep.subr.mxu0 0.0
  %748 = vmatpush1.msra.mxu0 0.0
  %749 = vmatprep.subr.mxu0 0.0
  %750 = vmatpush1.msra.mxu0 0.0
  %751 = vmatprep.subr.mxu0 0.0
  %752 = vmatpush1.msra.mxu0 0.0
  %753 = vmatprep.subr.mxu0 0.0
  %754 = vmatpush1.msra.mxu0 0.0
  %755 = vmatprep.subr.mxu0 0.0
  %756 = vmatpush1.msra.mxu0 0.0
  %757 = vmatprep.subr.mxu0 0.0
  %758 = vmatpush1.msra.mxu0 0.0
  %759 = vmatprep.subr.mxu0 0.0
  %760 = vmatpush1.msra.mxu0 0.0
  %761 = vmatprep.subr.mxu0 0.0
  %762 = vmatpush1.msra.mxu0 0.0
  %763 = vmatprep.subr.mxu0 0.0
  %764 = vmatpush1.msra.mxu0 0.0
  %765 = vmatprep.subr.mxu0 0.0
  %766 = vmatpush1.msra.mxu0 0.0
  %767 = vmatprep.subr.mxu0 0.0
  %768 = vmatpush1.msra.mxu0 0.0
  %769 = vmatprep.subr.mxu0 0.0
  %770 = vmatpush1.msra.mxu0 0.0
  %771 = vmatprep.subr.mxu0 0.0
  %772 = vmatpush1.msra.mxu0 0.0
  %773 = vmatprep.subr.mxu0 0.0
  %774 = vmatpush1.msra.mxu0 0.0
  %775 = vmatprep.subr.mxu0 0.0
  %776 = vmatpush1.msra.mxu0 0.0
  %777 = vmatprep.subr.mxu0 0.0
  %778 = vmatpush1.msra.mxu0 0.0
  %779 = vmatprep.subr.mxu0 0.0
  %780 = vmatpush1.msra.mxu0 0.0
  %781 = vmatprep.subr.mxu0 0.0
  %782 = vmatpush1.msra.mxu0 0.0
  %783 = vmatprep.subr.mxu0 0.0
  %784 = vmatpush1.msra.mxu0 0.0
  %785 = vmatprep.subr.mxu0 0.0
  %786 = vmatpush1.msra.mxu0 0.0
  %787 = vmatprep.subr.mxu0 0.0
  %788 = vmatpush1.msra.mxu0 0.0
  %789 = vmatprep.subr.mxu0 0.0
  %790 = vmatpush1.msra.mxu0 0.0
  %791 = vmatprep.subr.mxu0 0.0
  %792 = vmatpush1.msra.mxu0 0.0
  %793 = vmatprep.subr.mxu0 0.0
  %794 = vmatpush1.msra.mxu0 0.0
  %795 = vmatprep.mubr.f32.mxu0 0.0
  %796 = vmatmul.mubr.f32.gmra.mrb[0].mxu0 %v729
  %v797 = vpop.f32.mrb[0].mxu0
  %v798 = vadd.f32 0.0, %v797
  %v799 = vpop.f32.mrb[0].mxu0
  %800 = vdwg.mxu0
  %v801 = vadd.f32 %v727, %v798
  %v802 = vtanh.pop %v801
  %803 = vst.msk [vmem:[#allocation3 + $0x38] sm:$0xff] %vm100, %v802
  %804 = vst.msk [vmem:[#allocation3] sm:$0xff] %vm250, %v802
  %v805 = vld [vmem:[#allocation3] sm:$0xff]
  %v806 = vld [vmem:[#allocation3 + $0x8] sm:$0xff]
  %v807 = vld [vmem:[#allocation3 + $0x10] sm:$0xff]
  %v808 = vld [vmem:[#allocation3 + $0x18] sm:$0xff]
  %v809 = vld [vmem:[#allocation3 + $0x20] sm:$0xff]
  %v810 = vld [vmem:[#allocation3 + $0x28] sm:$0xff]
  %v811 = vld [vmem:[#allocation3 + $0x30] sm:$0xff]
  %v812 = vld [vmem:[#allocation3 + $0x38] sm:$0xff]
  %v813 = vld [vmem:[%s5] sm:$0xff]
  %v814 = vld [vmem:[%s5 + $0x8] sm:$0xff]
  %v815 = vld [vmem:[%s5 + $0x10] sm:$0xff]
  %v816 = vld [vmem:[%s5 + $0x18] sm:$0xff]
  %v817 = vld [vmem:[%s5 + $0x20] sm:$0xff]
  %v818 = vld [vmem:[%s5 + $0x28] sm:$0xff]
  %v819 = vld [vmem:[%s5 + $0x30] sm:$0xff]
  %v820 = vld [vmem:[%s5 + $0x38] sm:$0xff]
  %v821 = vld [vmem:[%s6] sm:$0x1]
  %v823 = vlaneseq
  %v824 = vshrl.u32 %v823, 7
  %v825 = vsub.s32 0, %v824
  %v826 = vrot.slane %v821, %v825
  %v829 = vsel %vm230, %v805, 0
  %v832 = vsel %vm230, %v806, 0
  %v835 = vsel %vm230, %v807, 0
  %v838 = vsel %vm230, %v808, 0
  %v841 = vsel %vm230, %v809, 0
  %v844 = vsel %vm230, %v810, 0
  %v847 = vsel %vm230, %v811, 0
  %v850 = vsel %vm230, %v812, 0
  %852 = vmatprep.subr.mxu0 0.0
  %853 = vmatpush1.msra.mxu0 %v813
  %854 = vmatprep.subr.mxu0 0.0
  %855 = vmatpush1.msra.mxu0 %v814
  %856 = vmatprep.subr.mxu0 0.0
  %857 = vmatpush1.msra.mxu0 %v815
  %858 = vmatprep.subr.mxu0 0.0
  %859 = vmatpush1.msra.mxu0 %v816
  %860 = vmatprep.subr.mxu0 0.0
  %861 = vmatpush1.msra.mxu0 %v817
  %862 = vmatprep.subr.mxu0 0.0
  %863 = vmatpush1.msra.mxu0 %v818
  %864 = vmatprep.subr.mxu0 0.0
  %865 = vmatpush1.msra.mxu0 %v819
  %866 = vmatprep.subr.mxu0 0.0
  %867 = vmatpush1.msra.mxu0 %v820
  %868 = vmatprep.subr.mxu0 0.0
  %869 = vmatpush1.msra.mxu0 0.0
  %870 = vmatprep.subr.mxu0 0.0
  %871 = vmatpush1.msra.mxu0 0.0
  %872 = vmatprep.subr.mxu0 0.0
  %873 = vmatpush1.msra.mxu0 0.0
  %874 = vmatprep.subr.mxu0 0.0
  %875 = vmatpush1.msra.mxu0 0.0
  %876 = vmatprep.subr.mxu0 0.0
  %877 = vmatpush1.msra.mxu0 0.0
  %878 = vmatprep.subr.mxu0 0.0
  %879 = vmatpush1.msra.mxu0 0.0
  %880 = vmatprep.subr.mxu0 0.0
  %881 = vmatpush1.msra.mxu0 0.0
  %882 = vmatprep.subr.mxu0 0.0
  %883 = vmatpush1.msra.mxu0 0.0
  %884 = vmatprep.subr.mxu0 0.0
  %885 = vmatpush1.msra.mxu0 0.0
  %886 = vmatprep.subr.mxu0 0.0
  %887 = vmatpush1.msra.mxu0 0.0
  %888 = vmatprep.subr.mxu0 0.0
  %889 = vmatpush1.msra.mxu0 0.0
  %890 = vmatprep.subr.mxu0 0.0
  %891 = vmatpush1.msra.mxu0 0.0
  %892 = vmatprep.subr.mxu0 0.0
  %893 = vmatpush1.msra.mxu0 0.0
  %894 = vmatprep.subr.mxu0 0.0
  %895 = vmatpush1.msra.mxu0 0.0
  %896 = vmatprep.subr.mxu0 0.0
  %897 = vmatpush1.msra.mxu0 0.0
  %898 = vmatprep.subr.mxu0 0.0
  %899 = vmatpush1.msra.mxu0 0.0
  %900 = vmatprep.subr.mxu0 0.0
  %901 = vmatpush1.msra.mxu0 0.0
  %902 = vmatprep.subr.mxu0 0.0
  %903 = vmatpush1.msra.mxu0 0.0
  %904 = vmatprep.subr.mxu0 0.0
  %905 = vmatpush1.msra.mxu0 0.0
  %906 = vmatprep.subr.mxu0 0.0
  %907 = vmatpush1.msra.mxu0 0.0
  %908 = vmatprep.subr.mxu0 0.0
  %909 = vmatpush1.msra.mxu0 0.0
  %910 = vmatprep.subr.mxu0 0.0
  %911 = vmatpush1.msra.mxu0 0.0
  %912 = vmatprep.subr.mxu0 0.0
  %913 = vmatpush1.msra.mxu0 0.0
  %914 = vmatprep.subr.mxu0 0.0
  %915 = vmatpush1.msra.mxu0 0.0
  %916 = vmatprep.mubr.f32.mxu0 0.0
  %917 = vmatmul.mubr.f32.gmra.mrb[0].mxu0 %v829
  %v918 = vpop.f32.mrb[0].mxu0
  %v919 = vadd.f32 %v826, %v918
  %v920 = vpop.f32.mrb[0].mxu0
  %921 = vmatprep.mubr.f32.mxu0 0.0
  %922 = vmatmul.mubr.f32.gmra.mrb[0].mxu0 %v832
  %v923 = vpop.f32.mrb[0].mxu0
  %v924 = vadd.f32 %v826, %v923
  %v925 = vpop.f32.mrb[0].mxu0
  %926 = vmatprep.mubr.f32.mxu0 0.0
  %927 = vmatmul.mubr.f32.gmra.mrb[0].mxu0 %v835
  %v928 = vpop.f32.mrb[0].mxu0
  %v929 = vadd.f32 %v826, %v928
  %v930 = vpop.f32.mrb[0].mxu0
  %931 = vmatprep.mubr.f32.mxu0 0.0
  %932 = vmatmul.mubr.f32.gmra.mrb[0].mxu0 %v838
  %v933 = vpop.f32.mrb[0].mxu0
  %v934 = vadd.f32 %v826, %v933
  %v935 = vpop.f32.mrb[0].mxu0
  %936 = vmatprep.mubr.f32.mxu0 0.0
  %937 = vmatmul.mubr.f32.gmra.mrb[0].mxu0 %v841
  %v938 = vpop.f32.mrb[0].mxu0
  %v939 = vadd.f32 %v826, %v938
  %v940 = vpop.f32.mrb[0].mxu0
  %941 = vmatprep.mubr.f32.mxu0 0.0
  %942 = vmatmul.mubr.f32.gmra.mrb[0].mxu0 %v844
  %v943 = vpop.f32.mrb[0].mxu0
  %v944 = vadd.f32 %v826, %v943
  %v945 = vpop.f32.mrb[0].mxu0
  %946 = vmatprep.mubr.f32.mxu0 0.0
  %947 = vmatmul.mubr.f32.gmra.mrb[0].mxu0 %v847
  %v948 = vpop.f32.mrb[0].mxu0
  %v949 = vadd.f32 %v826, %v948
  %v950 = vpop.f32.mrb[0].mxu0
  %951 = vmatprep.mubr.f32.mxu0 0.0
  %952 = vmatmul.mubr.f32.gmra.mrb[0].mxu0 %v850
  %v953 = vpop.f32.mrb[0].mxu0
  %v954 = vadd.f32 %v826, %v953
  %v955 = vpop.f32.mrb[0].mxu0
  %956 = vdwg.mxu0
  %957 = vst.msk [vmem:[#allocation4] sm:$0xff] %vm100, %v919
  %958 = vst.msk [vmem:[#allocation4 + $0x8] sm:$0xff] %vm100, %v924
  %959 = vst.msk [vmem:[#allocation4 + $0x10] sm:$0xff] %vm100, %v929
  %960 = vst.msk [vmem:[#allocation4 + $0x18] sm:$0xff] %vm100, %v934
  %961 = vst.msk [vmem:[#allocation4 + $0x20] sm:$0xff] %vm100, %v939
  %962 = vst.msk [vmem:[#allocation4 + $0x28] sm:$0xff] %vm100, %v944
  %963 = vst.msk [vmem:[#allocation4 + $0x30] sm:$0xff] %vm100, %v949
  %964 = vst.msk [vmem:[#allocation4 + $0x38] sm:$0xff] %vm100, %v954
  %v965 = vld [vmem:[%s9] sm:$0xff]
  %v966 = vld [vmem:[%s9 + $0x8] sm:$0xff]
  %v967 = vld [vmem:[%s9 + $0x10] sm:$0xff]
  %v968 = vld [vmem:[%s9 + $0x18] sm:$0xff]
  %v969 = vld [vmem:[#allocation4] sm:$0xff]
  %v970 = vtanh.pop %v969
  %v971 = vsel %vm65, %v970, 0.0
  %v972 = vld [vmem:[#allocation4 + $0x8] sm:$0xff]
  %v974 = vsel %vm100, %v971, 0
  %976 = vmatprep.subr.mxu0 0.0
  %977 = vmatpush1.msra.mxu0 %v965
  %978 = vmatprep.subr.mxu0 0.0
  %979 = vmatpush1.msra.mxu0 %v966
  %980 = vmatprep.subr.mxu0 0.0
  %981 = vmatpush1.msra.mxu0 %v967
  %982 = vmatprep.subr.mxu0 0.0
  %983 = vmatpush1.msra.mxu0 %v968
  %984 = vmatprep.subr.mxu0 0.0
  %985 = vmatpush1.msra.mxu0 0.0
  %986 = vmatprep.subr.mxu0 0.0
  %987 = vmatpush1.msra.mxu0 0.0
  %988 = vmatprep.subr.mxu0 0.0
  %989 = vmatpush1.msra.mxu0 0.0
  %990 = vmatprep.subr.mxu0 0.0
  %991 = vmatpush1.msra.mxu0 0.0
  %992 = vmatprep.subr.mxu0 0.0
  %993 = vmatpush1.msra.mxu0 0.0
  %994 = vmatprep.subr.mxu0 0.0
  %995 = vmatpush1.msra.mxu0 0.0
  %996 = vmatprep.subr.mxu0 0.0
  %997 = vmatpush1.msra.mxu0 0.0
  %998 = vmatprep.subr.mxu0 0.0
  %999 = vmatpush1.msra.mxu0 0.0
  %1000 = vmatprep.subr.mxu0 0.0
  %1001 = vmatpush1.msra.mxu0 0.0
  %1002 = vmatprep.subr.mxu0 0.0
  %1003 = vmatpush1.msra.mxu0 0.0
  %1004 = vmatprep.subr.mxu0 0.0
  %1005 = vmatpush1.msra.mxu0 0.0
  %1006 = vmatprep.subr.mxu0 0.0
  %1007 = vmatpush1.msra.mxu0 0.0
  %1008 = vmatprep.subr.mxu0 0.0
  %1009 = vmatpush1.msra.mxu0 0.0
  %1010 = vmatprep.subr.mxu0 0.0
  %1011 = vmatpush1.msra.mxu0 0.0
  %1012 = vmatprep.subr.mxu0 0.0
  %1013 = vmatpush1.msra.mxu0 0.0
  %1014 = vmatprep.subr.mxu0 0.0
  %1015 = vmatpush1.msra.mxu0 0.0
  %1016 = vmatprep.subr.mxu0 0.0
  %1017 = vmatpush1.msra.mxu0 0.0
  %1018 = vmatprep.subr.mxu0 0.0
  %1019 = vmatpush1.msra.mxu0 0.0
  %1020 = vmatprep.subr.mxu0 0.0
  %1021 = vmatpush1.msra.mxu0 0.0
  %1022 = vmatprep.subr.mxu0 0.0
  %1023 = vmatpush1.msra.mxu0 0.0
  %1024 = vmatprep.subr.mxu0 0.0
  %1025 = vmatpush1.msra.mxu0 0.0
  %1026 = vmatprep.subr.mxu0 0.0
  %1027 = vmatpush1.msra.mxu0 0.0
  %1028 = vmatprep.subr.mxu0 0.0
  %1029 = vmatpush1.msra.mxu0 0.0
  %1030 = vmatprep.subr.mxu0 0.0
  %1031 = vmatpush1.msra.mxu0 0.0
  %1032 = vmatprep.subr.mxu0 0.0
  %1033 = vmatpush1.msra.mxu0 0.0
  %1034 = vmatprep.subr.mxu0 0.0
  %1035 = vmatpush1.msra.mxu0 0.0
  %1036 = vmatprep.subr.mxu0 0.0
  %1037 = vmatpush1.msra.mxu0 0.0
  %1038 = vmatprep.subr.mxu0 0.0
  %1039 = vmatpush1.msra.mxu0 0.0
  %1040 = vmatprep.mubr.f32.mxu0 0.0
  %1041 = vmatmul.mubr.f32.gmra.mrb[0].mxu0 %v974
  %v1042 = vpop.f32.mrb[0].mxu0
  %v1043 = vadd.f32 0.0, %v1042
  %v1044 = vpop.f32.mrb[0].mxu0
  %1045 = vdwg.mxu0
  %v1046 = vadd.f32 %v972, %v1043
  %v1047 = vtanh.pop %v1046
  %v1048 = vsel %vm66, %v1047, %v971
  %v1049 = vld [vmem:[#allocation4 + $0x10] sm:$0xff]
  %v1051 = vsel %vm100, %v1048, 0
  %1053 = vmatprep.subr.mxu0 0.0
  %1054 = vmatpush1.msra.mxu0 %v965
  %1055 = vmatprep.subr.mxu0 0.0
  %1056 = vmatpush1.msra.mxu0 %v966
  %1057 = vmatprep.subr.mxu0 0.0
  %1058 = vmatpush1.msra.mxu0 %v967
  %1059 = vmatprep.subr.mxu0 0.0
  %1060 = vmatpush1.msra.mxu0 %v968
  %1061 = vmatprep.subr.mxu0 0.0
  %1062 = vmatpush1.msra.mxu0 0.0
  %1063 = vmatprep.subr.mxu0 0.0
  %1064 = vmatpush1.msra.mxu0 0.0
  %1065 = vmatprep.subr.mxu0 0.0
  %1066 = vmatpush1.msra.mxu0 0.0
  %1067 = vmatprep.subr.mxu0 0.0
  %1068 = vmatpush1.msra.mxu0 0.0
  %1069 = vmatprep.subr.mxu0 0.0
  %1070 = vmatpush1.msra.mxu0 0.0
  %1071 = vmatprep.subr.mxu0 0.0
  %1072 = vmatpush1.msra.mxu0 0.0
  %1073 = vmatprep.subr.mxu0 0.0
  %1074 = vmatpush1.msra.mxu0 0.0
  %1075 = vmatprep.subr.mxu0 0.0
  %1076 = vmatpush1.msra.mxu0 0.0
  %1077 = vmatprep.subr.mxu0 0.0
  %1078 = vmatpush1.msra.mxu0 0.0
  %1079 = vmatprep.subr.mxu0 0.0
  %1080 = vmatpush1.msra.mxu0 0.0
  %1081 = vmatprep.subr.mxu0 0.0
  %1082 = vmatpush1.msra.mxu0 0.0
  %1083 = vmatprep.subr.mxu0 0.0
  %1084 = vmatpush1.msra.mxu0 0.0
  %1085 = vmatprep.subr.mxu0 0.0
  %1086 = vmatpush1.msra.mxu0 0.0
  %1087 = vmatprep.subr.mxu0 0.0
  %1088 = vmatpush1.msra.mxu0 0.0
  %1089 = vmatprep.subr.mxu0 0.0
  %1090 = vmatpush1.msra.mxu0 0.0
  %1091 = vmatprep.subr.mxu0 0.0
  %1092 = vmatpush1.msra.mxu0 0.0
  %1093 = vmatprep.subr.mxu0 0.0
  %1094 = vmatpush1.msra.mxu0 0.0
  %1095 = vmatprep.subr.mxu0 0.0
  %1096 = vmatpush1.msra.mxu0 0.0
  %1097 = vmatprep.subr.mxu0 0.0
  %1098 = vmatpush1.msra.mxu0 0.0
  %1099 = vmatprep.subr.mxu0 0.0
  %1100 = vmatpush1.msra.mxu0 0.0
  %1101 = vmatprep.subr.mxu0 0.0
  %1102 = vmatpush1.msra.mxu0 0.0
  %1103 = vmatprep.subr.mxu0 0.0
  %1104 = vmatpush1.msra.mxu0 0.0
  %1105 = vmatprep.subr.mxu0 0.0
  %1106 = vmatpush1.msra.mxu0 0.0
  %1107 = vmatprep.subr.mxu0 0.0
  %1108 = vmatpush1.msra.mxu0 0.0
  %1109 = vmatprep.subr.mxu0 0.0
  %1110 = vmatpush1.msra.mxu0 0.0
  %1111 = vmatprep.subr.mxu0 0.0
  %1112 = vmatpush1.msra.mxu0 0.0
  %1113 = vmatprep.subr.mxu0 0.0
  %1114 = vmatpush1.msra.mxu0 0.0
  %1115 = vmatprep.subr.mxu0 0.0
  %1116 = vmatpush1.msra.mxu0 0.0
  %1117 = vmatprep.mubr.f32.mxu0 0.0
  %1118 = vmatmul.mubr.f32.gmra.mrb[0].mxu0 %v1051
  %v1119 = vpop.f32.mrb[0].mxu0
  %v1120 = vadd.f32 0.0, %v1119
  %v1121 = vpop.f32.mrb[0].mxu0
  %1122 = vdwg.mxu0
  %v1123 = vadd.f32 %v1049, %v1120
  %v1124 = vtanh.pop %v1123
  %v1125 = vsel %vm67, %v1124, %v1048
  %v1126 = vld [vmem:[#allocation4 + $0x18] sm:$0xff]
  %v1128 = vsel %vm100, %v1125, 0
  %1130 = vmatprep.subr.mxu0 0.0
  %1131 = vmatpush1.msra.mxu0 %v965
  %1132 = vmatprep.subr.mxu0 0.0
  %1133 = vmatpush1.msra.mxu0 %v966
  %1134 = vmatprep.subr.mxu0 0.0
  %1135 = vmatpush1.msra.mxu0 %v967
  %1136 = vmatprep.subr.mxu0 0.0
  %1137 = vmatpush1.msra.mxu0 %v968
  %1138 = vmatprep.subr.mxu0 0.0
  %1139 = vmatpush1.msra.mxu0 0.0
  %1140 = vmatprep.subr.mxu0 0.0
  %1141 = vmatpush1.msra.mxu0 0.0
  %1142 = vmatprep.subr.mxu0 0.0
  %1143 = vmatpush1.msra.mxu0 0.0
  %1144 = vmatprep.subr.mxu0 0.0
  %1145 = vmatpush1.msra.mxu0 0.0
  %1146 = vmatprep.subr.mxu0 0.0
  %1147 = vmatpush1.msra.mxu0 0.0
  %1148 = vmatprep.subr.mxu0 0.0
  %1149 = vmatpush1.msra.mxu0 0.0
  %1150 = vmatprep.subr.mxu0 0.0
  %1151 = vmatpush1.msra.mxu0 0.0
  %1152 = vmatprep.subr.mxu0 0.0
  %1153 = vmatpush1.msra.mxu0 0.0
  %1154 = vmatprep.subr.mxu0 0.0
  %1155 = vmatpush1.msra.mxu0 0.0
  %1156 = vmatprep.subr.mxu0 0.0
  %1157 = vmatpush1.msra.mxu0 0.0
  %1158 = vmatprep.subr.mxu0 0.0
  %1159 = vmatpush1.msra.mxu0 0.0
  %1160 = vmatprep.subr.mxu0 0.0
  %1161 = vmatpush1.msra.mxu0 0.0
  %1162 = vmatprep.subr.mxu0 0.0
  %1163 = vmatpush1.msra.mxu0 0.0
  %1164 = vmatprep.subr.mxu0 0.0
  %1165 = vmatpush1.msra.mxu0 0.0
  %1166 = vmatprep.subr.mxu0 0.0
  %1167 = vmatpush1.msra.mxu0 0.0
  %1168 = vmatprep.subr.mxu0 0.0
  %1169 = vmatpush1.msra.mxu0 0.0
  %1170 = vmatprep.subr.mxu0 0.0
  %1171 = vmatpush1.msra.mxu0 0.0
  %1172 = vmatprep.subr.mxu0 0.0
  %1173 = vmatpush1.msra.mxu0 0.0
  %1174 = vmatprep.subr.mxu0 0.0
  %1175 = vmatpush1.msra.mxu0 0.0
  %1176 = vmatprep.subr.mxu0 0.0
  %1177 = vmatpush1.msra.mxu0 0.0
  %1178 = vmatprep.subr.mxu0 0.0
  %1179 = vmatpush1.msra.mxu0 0.0
  %1180 = vmatprep.subr.mxu0 0.0
  %1181 = vmatpush1.msra.mxu0 0.0
  %1182 = vmatprep.subr.mxu0 0.0
  %1183 = vmatpush1.msra.mxu0 0.0
  %1184 = vmatprep.subr.mxu0 0.0
  %1185 = vmatpush1.msra.mxu0 0.0
  %1186 = vmatprep.subr.mxu0 0.0
  %1187 = vmatpush1.msra.mxu0 0.0
  %1188 = vmatprep.subr.mxu0 0.0
  %1189 = vmatpush1.msra.mxu0 0.0
  %1190 = vmatprep.subr.mxu0 0.0
  %1191 = vmatpush1.msra.mxu0 0.0
  %1192 = vmatprep.subr.mxu0 0.0
  %1193 = vmatpush1.msra.mxu0 0.0
  %1194 = vmatprep.mubr.f32.mxu0 0.0
  %1195 = vmatmul.mubr.f32.gmra.mrb[0].mxu0 %v1128
  %v1196 = vpop.f32.mrb[0].mxu0
  %v1197 = vadd.f32 0.0, %v1196
  %v1198 = vpop.f32.mrb[0].mxu0
  %1199 = vdwg.mxu0
  %v1200 = vadd.f32 %v1126, %v1197
  %v1201 = vtanh.pop %v1200
  %v1202 = vsel %vm68, %v1201, %v1125
  %v1203 = vld [vmem:[#allocation4 + $0x20] sm:$0xff]
  %v1205 = vsel %vm100, %v1202, 0
  %1207 = vmatprep.subr.mxu0 0.0
  %1208 = vmatpush1.msra.mxu0 %v965
  %1209 = vmatprep.subr.mxu0 0.0
  %1210 = vmatpush1.msra.mxu0 %v966
  %1211 = vmatprep.subr.mxu0 0.0
  %1212 = vmatpush1.msra.mxu0 %v967
  %1213 = vmatprep.subr.mxu0 0.0
  %1214 = vmatpush1.msra.mxu0 %v968
  %1215 = vmatprep.subr.mxu0 0.0
  %1216 = vmatpush1.msra.mxu0 0.0
  %1217 = vmatprep.subr.mxu0 0.0
  %1218 = vmatpush1.msra.mxu0 0.0
  %1219 = vmatprep.subr.mxu0 0.0
  %1220 = vmatpush1.msra.mxu0 0.0
  %1221 = vmatprep.subr.mxu0 0.0
  %1222 = vmatpush1.msra.mxu0 0.0
  %1223 = vmatprep.subr.mxu0 0.0
  %1224 = vmatpush1.msra.mxu0 0.0
  %1225 = vmatprep.subr.mxu0 0.0
  %1226 = vmatpush1.msra.mxu0 0.0
  %1227 = vmatprep.subr.mxu0 0.0
  %1228 = vmatpush1.msra.mxu0 0.0
  %1229 = vmatprep.subr.mxu0 0.0
  %1230 = vmatpush1.msra.mxu0 0.0
  %1231 = vmatprep.subr.mxu0 0.0
  %1232 = vmatpush1.msra.mxu0 0.0
  %1233 = vmatprep.subr.mxu0 0.0
  %1234 = vmatpush1.msra.mxu0 0.0
  %1235 = vmatprep.subr.mxu0 0.0
  %1236 = vmatpush1.msra.mxu0 0.0
  %1237 = vmatprep.subr.mxu0 0.0
  %1238 = vmatpush1.msra.mxu0 0.0
  %1239 = vmatprep.subr.mxu0 0.0
  %1240 = vmatpush1.msra.mxu0 0.0
  %1241 = vmatprep.subr.mxu0 0.0
  %1242 = vmatpush1.msra.mxu0 0.0
  %1243 = vmatprep.subr.mxu0 0.0
  %1244 = vmatpush1.msra.mxu0 0.0
  %1245 = vmatprep.subr.mxu0 0.0
  %1246 = vmatpush1.msra.mxu0 0.0
  %1247 = vmatprep.subr.mxu0 0.0
  %1248 = vmatpush1.msra.mxu0 0.0
  %1249 = vmatprep.subr.mxu0 0.0
  %1250 = vmatpush1.msra.mxu0 0.0
  %1251 = vmatprep.subr.mxu0 0.0
  %1252 = vmatpush1.msra.mxu0 0.0
  %1253 = vmatprep.subr.mxu0 0.0
  %1254 = vmatpush1.msra.mxu0 0.0
  %1255 = vmatprep.subr.mxu0 0.0
  %1256 = vmatpush1.msra.mxu0 0.0
  %1257 = vmatprep.subr.mxu0 0.0
  %1258 = vmatpush1.msra.mxu0 0.0
  %1259 = vmatprep.subr.mxu0 0.0
  %1260 = vmatpush1.msra.mxu0 0.0
  %1261 = vmatprep.subr.mxu0 0.0
  %1262 = vmatpush1.msra.mxu0 0.0
  %1263 = vmatprep.subr.mxu0 0.0
  %1264 = vmatpush1.msra.mxu0 0.0
  %1265 = vmatprep.subr.mxu0 0.0
  %1266 = vmatpush1.msra.mxu0 0.0
  %1267 = vmatprep.subr.mxu0 0.0
  %1268 = vmatpush1.msra.mxu0 0.0
  %1269 = vmatprep.subr.mxu0 0.0
  %1270 = vmatpush1.msra.mxu0 0.0
  %1271 = vmatprep.mubr.f32.mxu0 0.0
  %1272 = vmatmul.mubr.f32.gmra.mrb[0].mxu0 %v1205
  %v1273 = vpop.f32.mrb[0].mxu0
  %v1274 = vadd.f32 0.0, %v1273
  %v1275 = vpop.f32.mrb[0].mxu0
  %1276 = vdwg.mxu0
  %v1277 = vadd.f32 %v1203, %v1274
  %v1278 = vtanh.pop %v1277
  %v1279 = vsel %vm69, %v1278, %v1202
  %v1280 = vld [vmem:[#allocation4 + $0x28] sm:$0xff]
  %v1282 = vsel %vm100, %v1279, 0
  %1284 = vmatprep.subr.mxu0 0.0
  %1285 = vmatpush1.msra.mxu0 %v965
  %1286 = vmatprep.subr.mxu0 0.0
  %1287 = vmatpush1.msra.mxu0 %v966
  %1288 = vmatprep.subr.mxu0 0.0
  %1289 = vmatpush1.msra.mxu0 %v967
  %1290 = vmatprep.subr.mxu0 0.0
  %1291 = vmatpush1.msra.mxu0 %v968
  %1292 = vmatprep.subr.mxu0 0.0
  %1293 = vmatpush1.msra.mxu0 0.0
  %1294 = vmatprep.subr.mxu0 0.0
  %1295 = vmatpush1.msra.mxu0 0.0
  %1296 = vmatprep.subr.mxu0 0.0
  %1297 = vmatpush1.msra.mxu0 0.0
  %1298 = vmatprep.subr.mxu0 0.0
  %1299 = vmatpush1.msra.mxu0 0.0
  %1300 = vmatprep.subr.mxu0 0.0
  %1301 = vmatpush1.msra.mxu0 0.0
  %1302 = vmatprep.subr.mxu0 0.0
  %1303 = vmatpush1.msra.mxu0 0.0
  %1304 = vmatprep.subr.mxu0 0.0
  %1305 = vmatpush1.msra.mxu0 0.0
  %1306 = vmatprep.subr.mxu0 0.0
  %1307 = vmatpush1.msra.mxu0 0.0
  %1308 = vmatprep.subr.mxu0 0.0
  %1309 = vmatpush1.msra.mxu0 0.0
  %1310 = vmatprep.subr.mxu0 0.0
  %1311 = vmatpush1.msra.mxu0 0.0
  %1312 = vmatprep.subr.mxu0 0.0
  %1313 = vmatpush1.msra.mxu0 0.0
  %1314 = vmatprep.subr.mxu0 0.0
  %1315 = vmatpush1.msra.mxu0 0.0
  %1316 = vmatprep.subr.mxu0 0.0
  %1317 = vmatpush1.msra.mxu0 0.0
  %1318 = vmatprep.subr.mxu0 0.0
  %1319 = vmatpush1.msra.mxu0 0.0
  %1320 = vmatprep.subr.mxu0 0.0
  %1321 = vmatpush1.msra.mxu0 0.0
  %1322 = vmatprep.subr.mxu0 0.0
  %1323 = vmatpush1.msra.mxu0 0.0
  %1324 = vmatprep.subr.mxu0 0.0
  %1325 = vmatpush1.msra.mxu0 0.0
  %1326 = vmatprep.subr.mxu0 0.0
  %1327 = vmatpush1.msra.mxu0 0.0
  %1328 = vmatprep.subr.mxu0 0.0
  %1329 = vmatpush1.msra.mxu0 0.0
  %1330 = vmatprep.subr.mxu0 0.0
  %1331 = vmatpush1.msra.mxu0 0.0
  %1332 = vmatprep.subr.mxu0 0.0
  %1333 = vmatpush1.msra.mxu0 0.0
  %1334 = vmatprep.subr.mxu0 0.0
  %1335 = vmatpush1.msra.mxu0 0.0
  %1336 = vmatprep.subr.mxu0 0.0
  %1337 = vmatpush1.msra.mxu0 0.0
  %1338 = vmatprep.subr.mxu0 0.0
  %1339 = vmatpush1.msra.mxu0 0.0
  %1340 = vmatprep.subr.mxu0 0.0
  %1341 = vmatpush1.msra.mxu0 0.0
  %1342 = vmatprep.subr.mxu0 0.0
  %1343 = vmatpush1.msra.mxu0 0.0
  %1344 = vmatprep.subr.mxu0 0.0
  %1345 = vmatpush1.msra.mxu0 0.0
  %1346 = vmatprep.subr.mxu0 0.0
  %1347 = vmatpush1.msra.mxu0 0.0
  %1348 = vmatprep.mubr.f32.mxu0 0.0
  %1349 = vmatmul.mubr.f32.gmra.mrb[0].mxu0 %v1282
  %v1350 = vpop.f32.mrb[0].mxu0
  %v1351 = vadd.f32 0.0, %v1350
  %v1352 = vpop.f32.mrb[0].mxu0
  %1353 = vdwg.mxu0
  %v1354 = vadd.f32 %v1280, %v1351
  %v1355 = vtanh.pop %v1354
  %v1356 = vsel %vm70, %v1355, %v1279
  %v1357 = vld [vmem:[#allocation4 + $0x30] sm:$0xff]
  %v1359 = vsel %vm100, %v1356, 0
  %1361 = vmatprep.subr.mxu0 0.0
  %1362 = vmatpush1.msra.mxu0 %v965
  %1363 = vmatprep.subr.mxu0 0.0
  %1364 = vmatpush1.msra.mxu0 %v966
  %1365 = vmatprep.subr.mxu0 0.0
  %1366 = vmatpush1.msra.mxu0 %v967
  %1367 = vmatprep.subr.mxu0 0.0
  %1368 = vmatpush1.msra.mxu0 %v968
  %1369 = vmatprep.subr.mxu0 0.0
  %1370 = vmatpush1.msra.mxu0 0.0
  %1371 = vmatprep.subr.mxu0 0.0
  %1372 = vmatpush1.msra.mxu0 0.0
  %1373 = vmatprep.subr.mxu0 0.0
  %1374 = vmatpush1.msra.mxu0 0.0
  %1375 = vmatprep.subr.mxu0 0.0
  %1376 = vmatpush1.msra.mxu0 0.0
  %1377 = vmatprep.subr.mxu0 0.0
  %1378 = vmatpush1.msra.mxu0 0.0
  %1379 = vmatprep.subr.mxu0 0.0
  %1380 = vmatpush1.msra.mxu0 0.0
  %1381 = vmatprep.subr.mxu0 0.0
  %1382 = vmatpush1.msra.mxu0 0.0
  %1383 = vmatprep.subr.mxu0 0.0
  %1384 = vmatpush1.msra.mxu0 0.0
  %1385 = vmatprep.subr.mxu0 0.0
  %1386 = vmatpush1.msra.mxu0 0.0
  %1387 = vmatprep.subr.mxu0 0.0
  %1388 = vmatpush1.msra.mxu0 0.0
  %1389 = vmatprep.subr.mxu0 0.0
  %1390 = vmatpush1.msra.mxu0 0.0
  %1391 = vmatprep.subr.mxu0 0.0
  %1392 = vmatpush1.msra.mxu0 0.0
  %1393 = vmatprep.subr.mxu0 0.0
  %1394 = vmatpush1.msra.mxu0 0.0
  %1395 = vmatprep.subr.mxu0 0.0
  %1396 = vmatpush1.msra.mxu0 0.0
  %1397 = vmatprep.subr.mxu0 0.0
  %1398 = vmatpush1.msra.mxu0 0.0
  %1399 = vmatprep.subr.mxu0 0.0
  %1400 = vmatpush1.msra.mxu0 0.0
  %1401 = vmatprep.subr.mxu0 0.0
  %1402 = vmatpush1.msra.mxu0 0.0
  %1403 = vmatprep.subr.mxu0 0.0
  %1404 = vmatpush1.msra.mxu0 0.0
  %1405 = vmatprep.subr.mxu0 0.0
  %1406 = vmatpush1.msra.mxu0 0.0
  %1407 = vmatprep.subr.mxu0 0.0
  %1408 = vmatpush1.msra.mxu0 0.0
  %1409 = vmatprep.subr.mxu0 0.0
  %1410 = vmatpush1.msra.mxu0 0.0
  %1411 = vmatprep.subr.mxu0 0.0
  %1412 = vmatpush1.msra.mxu0 0.0
  %1413 = vmatprep.subr.mxu0 0.0
  %1414 = vmatpush1.msra.mxu0 0.0
  %1415 = vmatprep.subr.mxu0 0.0
  %1416 = vmatpush1.msra.mxu0 0.0
  %1417 = vmatprep.subr.mxu0 0.0
  %1418 = vmatpush1.msra.mxu0 0.0
  %1419 = vmatprep.subr.mxu0 0.0
  %1420 = vmatpush1.msra.mxu0 0.0
  %1421 = vmatprep.subr.mxu0 0.0
  %1422 = vmatpush1.msra.mxu0 0.0
  %1423 = vmatprep.subr.mxu0 0.0
  %1424 = vmatpush1.msra.mxu0 0.0
  %1425 = vmatprep.mubr.f32.mxu0 0.0
  %1426 = vmatmul.mubr.f32.gmra.mrb[0].mxu0 %v1359
  %v1427 = vpop.f32.mrb[0].mxu0
  %v1428 = vadd.f32 0.0, %v1427
  %v1429 = vpop.f32.mrb[0].mxu0
  %1430 = vdwg.mxu0
  %v1431 = vadd.f32 %v1357, %v1428
  %v1432 = vtanh.pop %v1431
  %v1433 = vsel %vm71, %v1432, %v1356
  %v1434 = vld [vmem:[#allocation4 + $0x38] sm:$0xff]
  %v1436 = vsel %vm100, %v1433, 0
  %1438 = vmatprep.subr.mxu0 0.0
  %1439 = vmatpush1.msra.mxu0 %v965
  %1440 = vmatprep.subr.mxu0 0.0
  %1441 = vmatpush1.msra.mxu0 %v966
  %1442 = vmatprep.subr.mxu0 0.0
  %1443 = vmatpush1.msra.mxu0 %v967
  %1444 = vmatprep.subr.mxu0 0.0
  %1445 = vmatpush1.msra.mxu0 %v968
  %1446 = vmatprep.subr.mxu0 0.0
  %1447 = vmatpush1.msra.mxu0 0.0
  %1448 = vmatprep.subr.mxu0 0.0
  %1449 = vmatpush1.msra.mxu0 0.0
  %1450 = vmatprep.subr.mxu0 0.0
  %1451 = vmatpush1.msra.mxu0 0.0
  %1452 = vmatprep.subr.mxu0 0.0
  %1453 = vmatpush1.msra.mxu0 0.0
  %1454 = vmatprep.subr.mxu0 0.0
  %1455 = vmatpush1.msra.mxu0 0.0
  %1456 = vmatprep.subr.mxu0 0.0
  %1457 = vmatpush1.msra.mxu0 0.0
  %1458 = vmatprep.subr.mxu0 0.0
  %1459 = vmatpush1.msra.mxu0 0.0
  %1460 = vmatprep.subr.mxu0 0.0
  %1461 = vmatpush1.msra.mxu0 0.0
  %1462 = vmatprep.subr.mxu0 0.0
  %1463 = vmatpush1.msra.mxu0 0.0
  %1464 = vmatprep.subr.mxu0 0.0
  %1465 = vmatpush1.msra.mxu0 0.0
  %1466 = vmatprep.subr.mxu0 0.0
  %1467 = vmatpush1.msra.mxu0 0.0
  %1468 = vmatprep.subr.mxu0 0.0
  %1469 = vmatpush1.msra.mxu0 0.0
  %1470 = vmatprep.subr.mxu0 0.0
  %1471 = vmatpush1.msra.mxu0 0.0
  %1472 = vmatprep.subr.mxu0 0.0
  %1473 = vmatpush1.msra.mxu0 0.0
  %1474 = vmatprep.subr.mxu0 0.0
  %1475 = vmatpush1.msra.mxu0 0.0
  %1476 = vmatprep.subr.mxu0 0.0
  %1477 = vmatpush1.msra.mxu0 0.0
  %1478 = vmatprep.subr.mxu0 0.0
  %1479 = vmatpush1.msra.mxu0 0.0
  %1480 = vmatprep.subr.mxu0 0.0
  %1481 = vmatpush1.msra.mxu0 0.0
  %1482 = vmatprep.subr.mxu0 0.0
  %1483 = vmatpush1.msra.mxu0 0.0
  %1484 = vmatprep.subr.mxu0 0.0
  %1485 = vmatpush1.msra.mxu0 0.0
  %1486 = vmatprep.subr.mxu0 0.0
  %1487 = vmatpush1.msra.mxu0 0.0
  %1488 = vmatprep.subr.mxu0 0.0
  %1489 = vmatpush1.msra.mxu0 0.0
  %1490 = vmatprep.subr.mxu0 0.0
  %1491 = vmatpush1.msra.mxu0 0.0
  %1492 = vmatprep.subr.mxu0 0.0
  %1493 = vmatpush1.msra.mxu0 0.0
  %1494 = vmatprep.subr.mxu0 0.0
  %1495 = vmatpush1.msra.mxu0 0.0
  %1496 = vmatprep.subr.mxu0 0.0
  %1497 = vmatpush1.msra.mxu0 0.0
  %1498 = vmatprep.subr.mxu0 0.0
  %1499 = vmatpush1.msra.mxu0 0.0
  %1500 = vmatprep.subr.mxu0 0.0
  %1501 = vmatpush1.msra.mxu0 0.0
  %1502 = vmatprep.mubr.f32.mxu0 0.0
  %1503 = vmatmul.mubr.f32.gmra.mrb[0].mxu0 %v1436
  %v1504 = vpop.f32.mrb[0].mxu0
  %v1505 = vadd.f32 0.0, %v1504
  %v1506 = vpop.f32.mrb[0].mxu0
  %1507 = vdwg.mxu0
  %v1508 = vadd.f32 %v1434, %v1505
  %v1509 = vtanh.pop %v1508
  %v1510 = vsel %vm72, %v1509, %v1433
  %v1511 = vld [vmem:[#allocation3] sm:$0xff]
  %v1512 = vsel %vm73, %v1511, 0.0
  %v1513 = vld [vmem:[#allocation3 + $0x8] sm:$0xff]
  %v1514 = vsel %vm74, %v1513, %v1512
  %v1515 = vld [vmem:[#allocation3 + $0x10] sm:$0xff]
  %v1516 = vsel %vm75, %v1515, %v1514
  %v1517 = vld [vmem:[#allocation3 + $0x18] sm:$0xff]
  %v1518 = vsel %vm76, %v1517, %v1516
  %v1519 = vld [vmem:[#allocation3 + $0x20] sm:$0xff]
  %v1520 = vsel %vm77, %v1519, %v1518
  %v1521 = vld [vmem:[#allocation3 + $0x28] sm:$0xff]
  %v1522 = vsel %vm78, %v1521, %v1520
  %v1523 = vld [vmem:[#allocation3 + $0x30] sm:$0xff]
  %v1524 = vsel %vm79, %v1523, %v1522
  %v1525 = vld [vmem:[#allocation3 + $0x38] sm:$0xff]
  %v1526 = vsel %vm80, %v1525, %v1524
  %v1527 = vld [vmem:[%s7] sm:$0xff]
  %v1528 = vld [vmem:[%s7 + $0x8] sm:$0xff]
  %v1529 = vld [vmem:[%s7 + $0x10] sm:$0xff]
  %v1530 = vld [vmem:[%s7 + $0x18] sm:$0xff]
  %v1531 = vld [vmem:[%s7 + $0x20] sm:$0xff]
  %v1532 = vld [vmem:[%s7 + $0x28] sm:$0xff]
  %v1533 = vld [vmem:[%s7 + $0x30] sm:$0xff]
  %v1534 = vld [vmem:[%s7 + $0x38] sm:$0xff]
  %v1535 = vld [vmem:[%s8] sm:$0x1]
  %v1537 = vlaneseq
  %v1538 = vshrl.u32 %v1537, 7
  %v1539 = vsub.s32 0, %v1538
  %v1540 = vrot.slane %v1535, %v1539
  %v1543 = vsel %vm230, %v1526, 0
  %1545 = vmatprep.subr.mxu0 0.0
  %1546 = vmatpush1.msra.mxu0 %v1527
  %1547 = vmatprep.subr.mxu0 0.0
  %1548 = vmatpush1.msra.mxu0 %v1528
  %1549 = vmatprep.subr.mxu0 0.0
  %1550 = vmatpush1.msra.mxu0 %v1529
  %1551 = vmatprep.subr.mxu0 0.0
  %1552 = vmatpush1.msra.mxu0 %v1530
  %1553 = vmatprep.subr.mxu0 0.0
  %1554 = vmatpush1.msra.mxu0 %v1531
  %1555 = vmatprep.subr.mxu0 0.0
  %1556 = vmatpush1.msra.mxu0 %v1532
  %1557 = vmatprep.subr.mxu0 0.0
  %1558 = vmatpush1.msra.mxu0 %v1533
  %1559 = vmatprep.subr.mxu0 0.0
  %1560 = vmatpush1.msra.mxu0 %v1534
  %1561 = vmatprep.subr.mxu0 0.0
  %1562 = vmatpush1.msra.mxu0 0.0
  %1563 = vmatprep.subr.mxu0 0.0
  %1564 = vmatpush1.msra.mxu0 0.0
  %1565 = vmatprep.subr.mxu0 0.0
  %1566 = vmatpush1.msra.mxu0 0.0
  %1567 = vmatprep.subr.mxu0 0.0
  %1568 = vmatpush1.msra.mxu0 0.0
  %1569 = vmatprep.subr.mxu0 0.0
  %1570 = vmatpush1.msra.mxu0 0.0
  %1571 = vmatprep.subr.mxu0 0.0
  %1572 = vmatpush1.msra.mxu0 0.0
  %1573 = vmatprep.subr.mxu0 0.0
  %1574 = vmatpush1.msra.mxu0 0.0
  %1575 = vmatprep.subr.mxu0 0.0
  %1576 = vmatpush1.msra.mxu0 0.0
  %1577 = vmatprep.subr.mxu0 0.0
  %1578 = vmatpush1.msra.mxu0 0.0
  %1579 = vmatprep.subr.mxu0 0.0
  %1580 = vmatpush1.msra.mxu0 0.0
  %1581 = vmatprep.subr.mxu0 0.0
  %1582 = vmatpush1.msra.mxu0 0.0
  %1583 = vmatprep.subr.mxu0 0.0
  %1584 = vmatpush1.msra.mxu0 0.0
  %1585 = vmatprep.subr.mxu0 0.0
  %1586 = vmatpush1.msra.mxu0 0.0
  %1587 = vmatprep.subr.mxu0 0.0
  %1588 = vmatpush1.msra.mxu0 0.0
  %1589 = vmatprep.subr.mxu0 0.0
  %1590 = vmatpush1.msra.mxu0 0.0
  %1591 = vmatprep.subr.mxu0 0.0
  %1592 = vmatpush1.msra.mxu0 0.0
  %1593 = vmatprep.subr.mxu0 0.0
  %1594 = vmatpush1.msra.mxu0 0.0
  %1595 = vmatprep.subr.mxu0 0.0
  %1596 = vmatpush1.msra.mxu0 0.0
  %1597 = vmatprep.subr.mxu0 0.0
  %1598 = vmatpush1.msra.mxu0 0.0
  %1599 = vmatprep.subr.mxu0 0.0
  %1600 = vmatpush1.msra.mxu0 0.0
  %1601 = vmatprep.subr.mxu0 0.0
  %1602 = vmatpush1.msra.mxu0 0.0
  %1603 = vmatprep.subr.mxu0 0.0
  %1604 = vmatpush1.msra.mxu0 0.0
  %1605 = vmatprep.subr.mxu0 0.0
  %1606 = vmatpush1.msra.mxu0 0.0
  %1607 = vmatprep.subr.mxu0 0.0
  %1608 = vmatpush1.msra.mxu0 0.0
  %1609 = vmatprep.mubr.f32.mxu0 0.0
  %1610 = vmatmul.mubr.f32.gmra.mrb[0].mxu0 %v1543
  %v1611 = vpop.f32.mrb[0].mxu0
  %v1612 = vadd.f32 %v1540, %v1611
  %v1613 = vpop.f32.mrb[0].mxu0
  %1614 = vdwg.mxu0
  %v1615 = vtanh.pop %v1612
  %v1616 = vld [vmem:[%s10] sm:$0xff]
  %v1617 = vld [vmem:[%s10 + $0x8] sm:$0xff]
  %v1618 = vld [vmem:[%s10 + $0x10] sm:$0xff]
  %v1619 = vld [vmem:[%s10 + $0x18] sm:$0xff]
  %v1620 = vld [vmem:[%s11] sm:$0xff]
  %v1621 = vld [vmem:[%s11 + $0x8] sm:$0xff]
  %v1622 = vld [vmem:[%s11 + $0x10] sm:$0xff]
  %v1623 = vld [vmem:[%s11 + $0x18] sm:$0xff]
  %v1625 = vsel %vm100, %v1615, 0
  %1627 = vmatprep.subr.mxu0 0.0
  %1628 = vmatpush1.msra.mxu0 %v1620
  %1629 = vmatprep.subr.mxu0 0.0
  %1630 = vmatpush1.msra.mxu0 %v1621
  %1631 = vmatprep.subr.mxu0 0.0
  %1632 = vmatpush1.msra.mxu0 %v1622
  %1633 = vmatprep.subr.mxu0 0.0
  %1634 = vmatpush1.msra.mxu0 %v1623
  %1635 = vmatprep.subr.mxu0 0.0
  %1636 = vmatpush1.msra.mxu0 0.0
  %1637 = vmatprep.subr.mxu0 0.0
  %1638 = vmatpush1.msra.mxu0 0.0
  %1639 = vmatprep.subr.mxu0 0.0
  %1640 = vmatpush1.msra.mxu0 0.0
  %1641 = vmatprep.subr.mxu0 0.0
  %1642 = vmatpush1.msra.mxu0 0.0
  %1643 = vmatprep.subr.mxu0 0.0
  %1644 = vmatpush1.msra.mxu0 0.0
  %1645 = vmatprep.subr.mxu0 0.0
  %1646 = vmatpush1.msra.mxu0 0.0
  %1647 = vmatprep.subr.mxu0 0.0
  %1648 = vmatpush1.msra.mxu0 0.0
  %1649 = vmatprep.subr.mxu0 0.0
  %1650 = vmatpush1.msra.mxu0 0.0
  %1651 = vmatprep.subr.mxu0 0.0
  %1652 = vmatpush1.msra.mxu0 0.0
  %1653 = vmatprep.subr.mxu0 0.0
  %1654 = vmatpush1.msra.mxu0 0.0
  %1655 = vmatprep.subr.mxu0 0.0
  %1656 = vmatpush1.msra.mxu0 0.0
  %1657 = vmatprep.subr.mxu0 0.0
  %1658 = vmatpush1.msra.mxu0 0.0
  %1659 = vmatprep.subr.mxu0 0.0
  %1660 = vmatpush1.msra.mxu0 0.0
  %1661 = vmatprep.subr.mxu0 0.0
  %1662 = vmatpush1.msra.mxu0 0.0
  %1663 = vmatprep.subr.mxu0 0.0
  %1664 = vmatpush1.msra.mxu0 0.0
  %1665 = vmatprep.subr.mxu0 0.0
  %1666 = vmatpush1.msra.mxu0 0.0
  %1667 = vmatprep.subr.mxu0 0.0
  %1668 = vmatpush1.msra.mxu0 0.0
  %1669 = vmatprep.subr.mxu0 0.0
  %1670 = vmatpush1.msra.mxu0 0.0
  %1671 = vmatprep.subr.mxu0 0.0
  %1672 = vmatpush1.msra.mxu0 0.0
  %1673 = vmatprep.subr.mxu0 0.0
  %1674 = vmatpush1.msra.mxu0 0.0
  %1675 = vmatprep.subr.mxu0 0.0
  %1676 = vmatpush1.msra.mxu0 0.0
  %1677 = vmatprep.subr.mxu0 0.0
  %1678 = vmatpush1.msra.mxu0 0.0
  %1679 = vmatprep.subr.mxu0 0.0
  %1680 = vmatpush1.msra.mxu0 0.0
  %1681 = vmatprep.subr.mxu0 0.0
  %1682 = vmatpush1.msra.mxu0 0.0
  %1683 = vmatprep.subr.mxu0 0.0
  %1684 = vmatpush1.msra.mxu0 0.0
  %1685 = vmatprep.subr.mxu0 0.0
  %1686 = vmatpush1.msra.mxu0 0.0
  %1687 = vmatprep.subr.mxu0 0.0
  %1688 = vmatpush1.msra.mxu0 0.0
  %1689 = vmatprep.subr.mxu0 0.0
  %1690 = vmatpush1.msra.mxu0 0.0
  %1691 = vmatprep.mubr.f32.mxu0 0.0
  %1692 = vmatmul.mubr.f32.gmra.mrb[0].mxu0 %v1625
  %v1693 = vpop.f32.mrb[0].mxu0
  %v1694 = vadd.f32 0.0, %v1693
  %v1695 = vpop.f32.mrb[0].mxu0
  %1696 = vdwg.mxu0
  %v1698 = vsel %vm100, %v1510, 0
  %1700 = vmatprep.subr.mxu0 0.0
  %1701 = vmatpush1.msra.mxu0 %v1616
  %1702 = vmatprep.subr.mxu0 0.0
  %1703 = vmatpush1.msra.mxu0 %v1617
  %1704 = vmatprep.subr.mxu0 0.0
  %1705 = vmatpush1.msra.mxu0 %v1618
  %1706 = vmatprep.subr.mxu0 0.0
  %1707 = vmatpush1.msra.mxu0 %v1619
  %1708 = vmatprep.subr.mxu0 0.0
  %1709 = vmatpush1.msra.mxu0 0.0
  %1710 = vmatprep.subr.mxu0 0.0
  %1711 = vmatpush1.msra.mxu0 0.0
  %1712 = vmatprep.subr.mxu0 0.0
  %1713 = vmatpush1.msra.mxu0 0.0
  %1714 = vmatprep.subr.mxu0 0.0
  %1715 = vmatpush1.msra.mxu0 0.0
  %1716 = vmatprep.subr.mxu0 0.0
  %1717 = vmatpush1.msra.mxu0 0.0
  %1718 = vmatprep.subr.mxu0 0.0
  %1719 = vmatpush1.msra.mxu0 0.0
  %1720 = vmatprep.subr.mxu0 0.0
  %1721 = vmatpush1.msra.mxu0 0.0
  %1722 = vmatprep.subr.mxu0 0.0
  %1723 = vmatpush1.msra.mxu0 0.0
  %1724 = vmatprep.subr.mxu0 0.0
  %1725 = vmatpush1.msra.mxu0 0.0
  %1726 = vmatprep.subr.mxu0 0.0
  %1727 = vmatpush1.msra.mxu0 0.0
  %1728 = vmatprep.subr.mxu0 0.0
  %1729 = vmatpush1.msra.mxu0 0.0
  %1730 = vmatprep.subr.mxu0 0.0
  %1731 = vmatpush1.msra.mxu0 0.0
  %1732 = vmatprep.subr.mxu0 0.0
  %1733 = vmatpush1.msra.mxu0 0.0
  %1734 = vmatprep.subr.mxu0 0.0
  %1735 = vmatpush1.msra.mxu0 0.0
  %1736 = vmatprep.subr.mxu0 0.0
  %1737 = vmatpush1.msra.mxu0 0.0
  %1738 = vmatprep.subr.mxu0 0.0
  %1739 = vmatpush1.msra.mxu0 0.0
  %1740 = vmatprep.subr.mxu0 0.0
  %1741 = vmatpush1.msra.mxu0 0.0
  %1742 = vmatprep.subr.mxu0 0.0
  %1743 = vmatpush1.msra.mxu0 0.0
  %1744 = vmatprep.subr.mxu0 0.0
  %1745 = vmatpush1.msra.mxu0 0.0
  %1746 = vmatprep.subr.mxu0 0.0
  %1747 = vmatpush1.msra.mxu0 0.0
  %1748 = vmatprep.subr.mxu0 0.0
  %1749 = vmatpush1.msra.mxu0 0.0
  %1750 = vmatprep.subr.mxu0 0.0
  %1751 = vmatpush1.msra.mxu0 0.0
  %1752 = vmatprep.subr.mxu0 0.0
  %1753 = vmatpush1.msra.mxu0 0.0
  %1754 = vmatprep.subr.mxu0 0.0
  %1755 = vmatpush1.msra.mxu0 0.0
  %1756 = vmatprep.subr.mxu0 0.0
  %1757 = vmatpush1.msra.mxu0 0.0
  %1758 = vmatprep.subr.mxu0 0.0
  %1759 = vmatpush1.msra.mxu0 0.0
  %1760 = vmatprep.subr.mxu0 0.0
  %1761 = vmatpush1.msra.mxu0 0.0
  %1762 = vmatprep.subr.mxu0 0.0
  %1763 = vmatpush1.msra.mxu0 0.0
  %1764 = vmatprep.mubr.f32.mxu0 0.0
  %1765 = vmatmul.mubr.f32.gmra.mrb[0].mxu0 %v1698
  %v1766 = vpop.f32.mrb[0].mxu0
  %v1767 = vadd.f32 %v1694, %v1766
  %v1768 = vpop.f32.mrb[0].mxu0
  %1769 = vdwg.mxu0
  %v1770 = vld [vmem:[%s12] sm:$0x1]
  %v1772 = vlaneseq
  %v1773 = vshrl.u32 %v1772, 7
  %v1774 = vsub.s32 0, %v1773
  %v1775 = vrot.slane %v1770, %v1774
  %v1777 = vadd.f32 %v1767, %v1775
  %vm1778 = vcmask 31744
  %1779 = vst.msk [vmem:[%s13] sm:$0xff] %vm1778, %v1777
  // Predicated region
  $region54: #{tpu_custom_call.1} parent=0 // pred_check
    _
  $region55: #{tpu_custom_call.1} parent=0 // pred_check_branch
    %1781 = sbr.rel (0) target = $region57
  $region56: #{tpu_custom_call.1} parent=0 // pred_region
    _
  $region57: #{tpu_custom_call.1} parent=0 // pred_fallthru
    _
  // Predicated region
  $region58: #{tpu_custom_call.1} parent=0 // pred_check
    _
  $region59: #{tpu_custom_call.1} parent=0 // pred_check_branch
    %1783 = sbr.rel (0) target = $region61
  $region60: #{tpu_custom_call.1} parent=0 // pred_region
    _
  $region61: #{tpu_custom_call.1} parent=0 // pred_fallthru
    _

</llo_original>
